<compile_context>
chip_gen: v5e
topology: v5e:2x2
jax: 0.10.0
libtpu: 0.0.40
codegen_flags: <defaults>
</compile_context>

<pallas_src>
import functools

import jax
import jax.numpy as jnp
from jax.experimental import pallas as pl
from jax.experimental.pallas import tpu as pltpu


# TODO(synk): nn.GELU() defaults to the exact erf formulation; the tanh
# approximation is used here (and in the reference) because erf has no
# guaranteed Mosaic lowering. Max deviation is ~1e-3 relative.
def _gelu_tanh(x):
    c = 0.7978845608028654  # sqrt(2/pi)
    return 0.5 * x * (1.0 + jnp.tanh(c * (x + 0.044715 * x * x * x)))


def _leff_kernel(tok_ref, w1_ref, b1_ref, wdw_ref, b2_ref, w3_ref, b3_ref,
                 out_ref, pad_ref, *, h_patch, w_patch, matmul_dtype):
    """One batch tile. tok_ref/out_ref: (HW, BT, C) -- channels on lanes."""
    hw, bt, c = tok_ref.shape
    hidden = wdw_ref.shape[1]
    h, w = h_patch, w_patch

    # ---- conv1 (1x1) with BN1 folded, then GELU. bf16 MXU operands, f32 acc.
    x = tok_ref[...].astype(matmul_dtype).reshape(hw * bt, c)
    y = jnp.dot(x, w1_ref[...], preferred_element_type=jnp.float32) + b1_ref[...]
    y = _gelu_tanh(y)                                        # f32 (HW*BT, hidden)

    # ---- depthwise 3x3 conv (padding 1, groups=hidden) with BN2 folded, GELU.
    # Zero-padded VMEM scratch: zero the 1-wide border (4 small slice stores),
    # write the interior once, then every tap is a static leading-dim view.
    zrow = jnp.zeros((1, w + 2, bt, hidden), jnp.float32)
    zcol = jnp.zeros((h + 2, 1, bt, hidden), jnp.float32)
    pad_ref[0:1, :, :, :] = zrow
    pad_ref[h + 1:h + 2, :, :, :] = zrow
    pad_ref[:, 0:1, :, :] = zcol
    pad_ref[:, w + 1:w + 2, :, :] = zcol
    pad_ref[1:h + 1, 1:w + 1, :, :] = y.reshape(h, w, bt, hidden)

    def tap(ky, kx):
        t = wdw_ref[pl.ds(ky * 3 + kx, 1), :].reshape(1, 1, 1, hidden)
        return pad_ref[ky:ky + h, kx:kx + w, :, :] * t

    # Init with the centre tap + folded bias (no zeros pass, no trailing add).
    acc = tap(1, 1) + b2_ref[...].reshape(1, 1, 1, hidden)
    for ky in range(3):                                      # static unroll (8 taps)
        for kx in range(3):
            if ky == 1 and kx == 1:
                continue
            acc = acc + tap(ky, kx)
    y = _gelu_tanh(acc).astype(matmul_dtype).reshape(hw * bt, hidden)

    # ---- conv3 (1x1) with BN3 folded.
    out = jnp.dot(y, w3_ref[...], preferred_element_type=jnp.float32) + b3_ref[...]
    out_ref[...] = out.reshape(hw, bt, c).astype(out_ref.dtype)


def _fold_bn(gamma, beta, mean, var, eps):
    scale = gamma * jax.lax.rsqrt(var + eps)
    shift = beta - mean * scale
    return scale, shift


def _effective_params(params, *, eps, matmul_dtype):
    """Fold eval-mode BatchNorms (and conv biases) into the conv weights."""
    hidden = params["w1"].shape[1]
    c_out = params["w3"].shape[1]
    s1, t1 = _fold_bn(params["bn1_gamma"], params["bn1_beta"],
                      params["bn1_mean"], params["bn1_var"], eps)
    s2, t2 = _fold_bn(params["bn2_gamma"], params["bn2_beta"],
                      params["bn2_mean"], params["bn2_var"], eps)
    s3, t3 = _fold_bn(params["bn3_gamma"], params["bn3_beta"],
                      params["bn3_mean"], params["bn3_var"], eps)
    w1e = (params["w1"] * s1[None, :]).astype(matmul_dtype)       # MXU operand
    b1e = (params["b1"] * s1 + t1).reshape(1, hidden).astype(jnp.float32)
    wdwe = (params["w2"] * s2[None, None, :]).reshape(9, hidden).astype(jnp.float32)
    b2e = (params["b2"] * s2 + t2).reshape(1, hidden).astype(jnp.float32)
    w3e = (params["w3"] * s3[None, :]).astype(matmul_dtype)       # MXU operand
    b3e = (params["b3"] * s3 + t3).reshape(1, c_out).astype(jnp.float32)
    return w1e, b1e, wdwe, b2e, w3e, b3e


def _pick_block_b(B, HW, C, hidden, h_patch, w_patch, x_itemsize, w_itemsize,
                  vmem_budget_bytes):
    """Largest sublane-aligned batch tile whose live set fits the VMEM budget,
    capped so the batch grid keeps >=2 (ideally >=4) steps when B allows it
    (megacore sharding + DMA/compute overlap)."""
    per_b = (4 * HW * C * x_itemsize                         # in+out, double-buffered
             + (h_patch + 2) * (w_patch + 2) * hidden * 4    # padded scratch (f32)
             + 4 * HW * hidden * 4)                          # f32 intermediates
    weight_bytes = 2 * 2 * C * hidden * w_itemsize + 256 * 1024
    avail = max(vmem_budget_bytes - weight_bytes, 8 * per_b)
    block_b = max(8, int(avail // per_b) // 8 * 8)
    b8 = -(-B // 8) * 8
    if b8 >= 32:
        block_b = min(block_b, max(8, (b8 // 4) // 8 * 8))
    elif b8 >= 16:
        block_b = min(block_b, max(8, (b8 // 2) // 8 * 8))
    return max(8, min(block_b, b8))


def locally_enhanced_ff(x, params, *, h_patch, w_patch, block_b=None, eps=1e-5,
                        matmul_dtype=jnp.bfloat16,
                        vmem_budget_bytes=32 * 1024 * 1024):
    """Pallas forward of LocallyEnhancedFeedForward (eval-mode BatchNorm)."""
    B, N, C = x.shape
    HW = h_patch * w_patch
    assert N == HW + 1
    hidden = params["w1"].shape[1]
    # torch.cat((cls_token, tokens)) requires out_features == in_features.
    assert params["w3"].shape[1] == C
    assert params["w2"].shape == (3, 3, hidden)  # kernel_size=3 (module default)

    w1e, b1e, wdwe, b2e, w3e, b3e = _effective_params(
        params, eps=eps, matmul_dtype=matmul_dtype)

    if block_b is None:
        block_b = _pick_block_b(B, HW, C, hidden, h_patch, w_patch,
                                x.dtype.itemsize,
                                jnp.dtype(matmul_dtype).itemsize,
                                vmem_budget_bytes)
    assert block_b % 8 == 0, "batch tile must be sublane (8) aligned"
    B_pad = -(-B // block_b) * block_b

    # Layout plumbing (outside the kernel): cls token is a pure pass-through;
    # tokens go in spatial-leading so channels sit on lanes inside the kernel.
    # TODO(synk): eliminate these two HBM transposes (upstream (HW,B,C) layout
    # or in-kernel relayout before the store) for memory-bound production dims.
    cls_tok = x[:, :1, :]
    tokens_t = jnp.transpose(x[:, 1:, :], (1, 0, 2))          # (HW, B, C)
    if B_pad != B:
        tokens_t = jnp.pad(tokens_t, ((0, 0), (0, B_pad - B), (0, 0)))

    vmem_limit = int(min(max(vmem_budget_bytes * 5 // 4, 32 * 1024 * 1024),
                         48 * 1024 * 1024))                   # safe on v5e/v6e/v7x

    kernel = functools.partial(_leff_kernel, h_patch=h_patch, w_patch=w_patch,
                               matmul_dtype=matmul_dtype)
    out_t = pl.pallas_call(
        kernel,
        out_shape=jax.ShapeDtypeStruct((HW, B_pad, C), x.dtype),
        grid=(B_pad // block_b,),
        in_specs=[
            pl.BlockSpec((HW, block_b, C), lambda i: (0, i, 0)),   # tokens
            pl.BlockSpec((C, hidden), lambda i: (0, 0)),           # w1 (resident)
            pl.BlockSpec((1, hidden), lambda i: (0, 0)),           # b1
            pl.BlockSpec((9, hidden), lambda i: (0, 0)),           # depthwise taps
            pl.BlockSpec((1, hidden), lambda i: (0, 0)),           # b2
            pl.BlockSpec((hidden, C), lambda i: (0, 0)),           # w3
            pl.BlockSpec((1, C), lambda i: (0, 0)),                # b3
        ],
        out_specs=pl.BlockSpec((HW, block_b, C), lambda i: (0, i, 0)),
        scratch_shapes=[
            pltpu.VMEM((h_patch + 2, w_patch + 2, block_b, hidden), jnp.float32),
        ],
        compiler_params=pltpu.CompilerParams(
            dimension_semantics=("parallel",),
            vmem_limit_bytes=vmem_limit),
    )(tokens_t, w1e, b1e, wdwe, b2e, w3e, b3e)

    tokens_out = jnp.transpose(out_t[:, :B, :], (1, 0, 2))     # (B, HW, C)
    return jnp.concatenate([cls_tok, tokens_out], axis=1)


def locally_enhanced_ff_reference(x, params, *, h_patch, w_patch, eps=1e-5):
    """Pure-JAX f32 reference mirroring the PyTorch forward (eval-mode BN)."""
    B, N, C = x.shape
    HW = h_patch * w_patch
    hidden = params["w1"].shape[1]
    cls_tok, tokens = x[:, :1, :], x[:, 1:, :]
    t = tokens.reshape(B, h_patch, w_patch, C)

    def bn(y, pre):
        g = params[f"{pre}_gamma"]
        b = params[f"{pre}_beta"]
        m = params[f"{pre}_mean"]
        v = params[f"{pre}_var"]
        return (y - m) * jax.lax.rsqrt(v + eps) * g + b

    y = jnp.einsum("bhwc,cd->bhwd", t, params["w1"]) + params["b1"]
    y = _gelu_tanh(bn(y, "bn1"))
    dw = params["w2"].reshape(3, 3, 1, hidden)                 # HWIO, I=1
    y = jax.lax.conv_general_dilated(
        y, dw, window_strides=(1, 1), padding="SAME",
        dimension_numbers=("NHWC", "HWIO", "NHWC"),
        feature_group_count=hidden) + params["b2"]
    y = _gelu_tanh(bn(y, "bn2"))
    y = jnp.einsum("bhwd,dc->bhwc", y, params["w3"]) + params["b3"]
    y = bn(y, "bn3")
    tokens_out = y.reshape(B, HW, C)
    return jnp.concatenate([cls_tok, tokens_out], axis=1)


def _reference_folded(x, eff, *, h_patch, w_patch):
    """Reference using the same folded (possibly bf16-quantized) weights as the
    kernel wrapper -- apples-to-apples check for the bf16 MXU path."""
    w1e, b1e, wdwe, b2e, w3e, b3e = eff
    B, N, C = x.shape
    hidden = w1e.shape[1]
    cls_tok, tokens = x[:, :1, :], x[:, 1:, :]
    t = tokens.reshape(B, h_patch, w_patch, C)
    y = jnp.einsum("bhwc,cd->bhwd", t.astype(w1e.dtype), w1e,
                   preferred_element_type=jnp.float32) + b1e.reshape(hidden)
    y = _gelu_tanh(y)
    dw = wdwe.reshape(3, 3, 1, hidden).astype(jnp.float32)
    y = jax.lax.conv_general_dilated(
        y, dw, window_strides=(1, 1), padding="SAME",
        dimension_numbers=("NHWC", "HWIO", "NHWC"),
        feature_group_count=hidden) + b2e.reshape(hidden)
    y = _gelu_tanh(y)
    y = jnp.einsum("bhwd,dc->bhwc", y.astype(w3e.dtype), w3e,
                   preferred_element_type=jnp.float32) + b3e.reshape(C)
    tokens_out = y.reshape(B, h_patch * w_patch, C)
    return jnp.concatenate([cls_tok, tokens_out], axis=1)


if __name__ == "__main__":
    B, C, hidden = 2, 32, 64
    h_patch = w_patch = 4
    N = h_patch * w_patch + 1                                  # 17 (cls + 16 patches)

    key = jax.random.PRNGKey(0)
    ks = jax.random.split(key, 19)

    x = jax.random.normal(ks[0], (B, N, C), jnp.float32)
    params = {
        "w1": jax.random.normal(ks[1], (C, hidden), jnp.float32) * 0.1,
        "b1": jax.random.normal(ks[2], (hidden,), jnp.float32) * 0.1,
        "w2": jax.random.normal(ks[3], (3, 3, hidden), jnp.float32) * 0.1,
        "b2": jax.random.normal(ks[4], (hidden,), jnp.float32) * 0.1,
        "w3": jax.random.normal(ks[5], (hidden, C), jnp.float32) * 0.1,
        "b3": jax.random.normal(ks[6], (C,), jnp.float32) * 0.1,
        "bn1_gamma": 1.0 + 0.1 * jax.random.normal(ks[7], (hidden,), jnp.float32),
        "bn1_beta": 0.1 * jax.random.normal(ks[8], (hidden,), jnp.float32),
        "bn1_mean": 0.1 * jax.random.normal(ks[9], (hidden,), jnp.float32),
        "bn1_var": jax.random.uniform(ks[10], (hidden,), jnp.float32, 0.5, 1.5),
        "bn2_gamma": 1.0 + 0.1 * jax.random.normal(ks[11], (hidden,), jnp.float32),
        "bn2_beta": 0.1 * jax.random.normal(ks[12], (hidden,), jnp.float32),
        "bn2_mean": 0.1 * jax.random.normal(ks[13], (hidden,), jnp.float32),
        "bn2_var": jax.random.uniform(ks[14], (hidden,), jnp.float32, 0.5, 1.5),
        "bn3_gamma": 1.0 + 0.1 * jax.random.normal(ks[15], (C,), jnp.float32),
        "bn3_beta": 0.1 * jax.random.normal(ks[16], (C,), jnp.float32),
        "bn3_mean": 0.1 * jax.random.normal(ks[17], (C,), jnp.float32),
        "bn3_var": jax.random.uniform(ks[18], (C,), jnp.float32, 0.5, 1.5),
    }

    ref = locally_enhanced_ff_reference(x, params, h_patch=h_patch, w_patch=w_patch)

    # 1) Exact-precision path: validates module semantics (incl. BN folding and
    #    the padded-scratch depthwise rewrite) against the PyTorch-style ref.
    out_f32 = locally_enhanced_ff(x, params, h_patch=h_patch, w_patch=w_patch,
                                  matmul_dtype=jnp.float32)
    out_f32 = jax.block_until_ready(out_f32)
    assert out_f32.shape == (B, N, C), out_f32.shape
    assert jnp.allclose(out_f32, ref, atol=1e-4, rtol=1e-4), (
        float(jnp.max(jnp.abs(out_f32 - ref))))

    # 2) Performance path (bf16 MXU operands, f32 accumulation): validated
    #    against a reference using the identical bf16-quantized folded weights.
    eff_bf16 = _effective_params(params, eps=1e-5, matmul_dtype=jnp.bfloat16)
    ref_bf16 = _reference_folded(x, eff_bf16, h_patch=h_patch, w_patch=w_patch)
    out_bf16 = locally_enhanced_ff(x, params, h_patch=h_patch, w_patch=w_patch)
    out_bf16 = jax.block_until_ready(out_bf16)
    assert out_bf16.shape == (B, N, C), out_bf16.shape
    assert jnp.allclose(out_bf16, ref_bf16, atol=1e-3, rtol=1e-3), (
        float(jnp.max(jnp.abs(out_bf16 - ref_bf16))))

    print("KERNEL_OK")
</pallas_src>

<mosaic_0001>
module attributes {stable_mosaic.version = 11 : i64} {
  func.func @_leff_kernel(%arg0: i32, %arg1: memref<16x8x32xf32, #tpu.memory_space<vmem>>, %arg2: memref<32x64xf32, #tpu.memory_space<vmem>>, %arg3: memref<1x64xf32, #tpu.memory_space<vmem>>, %arg4: memref<9x64xf32, #tpu.memory_space<vmem>>, %arg5: memref<1x64xf32, #tpu.memory_space<vmem>>, %arg6: memref<64x32xf32, #tpu.memory_space<vmem>>, %arg7: memref<1x32xf32, #tpu.memory_space<vmem>>, %arg8: memref<16x8x32xf32, #tpu.memory_space<vmem>>, %arg9: memref<6x6x8x64xf32, #tpu.memory_space<vmem>>) attributes {dimension_semantics = [#tpu.dimension_semantics<parallel>], iteration_bounds = array<i64: 1>, scalar_prefetch = 0 : i64, scratch_operands = 1 : i64, tpu.core_type = #tpu.core_type<tc>, window_params = [{transform_indices = @transform_0, window_bounds = array<i64: 16, 8, 32>}, {pipeline_mode = #tpu.pipeline_mode<synchronous>, transform_indices = @transform_1, window_bounds = array<i64: 32, 64>}, {pipeline_mode = #tpu.pipeline_mode<synchronous>, transform_indices = @transform_2, window_bounds = array<i64: 1, 64>}, {pipeline_mode = #tpu.pipeline_mode<synchronous>, transform_indices = @transform_3, window_bounds = array<i64: 9, 64>}, {pipeline_mode = #tpu.pipeline_mode<synchronous>, transform_indices = @transform_4, window_bounds = array<i64: 1, 64>}, {pipeline_mode = #tpu.pipeline_mode<synchronous>, transform_indices = @transform_5, window_bounds = array<i64: 64, 32>}, {pipeline_mode = #tpu.pipeline_mode<synchronous>, transform_indices = @transform_6, window_bounds = array<i64: 1, 32>}, {transform_indices = @transform_7, window_bounds = array<i64: 16, 8, 32>}]} {
    %c0 = arith.constant 0 : index
    %c0_0 = arith.constant 0 : index
    %c0_1 = arith.constant 0 : index
    %0 = vector.load %arg1[%c0, %c0_0, %c0_1] : memref<16x8x32xf32, #tpu.memory_space<vmem>>, vector<16x8x32xf32>
    %1 = vector.shape_cast %0 : vector<16x8x32xf32> to vector<128x32xf32>
    %c0_2 = arith.constant 0 : index
    %c0_3 = arith.constant 0 : index
    %2 = vector.load %arg2[%c0_2, %c0_3] : memref<32x64xf32, #tpu.memory_space<vmem>>, vector<32x64xf32>
    %cst = arith.constant dense<0.000000e+00> : vector<128x64xf32>
    %3 = tpu.matmul %1, %2, %cst {dimension_numbers = #tpu.dot_dimension_numbers<[1], [0], [0], [1], [0, 0, 1, 1], [], []>} : vector<128x32xf32>, vector<32x64xf32>, vector<128x64xf32> -> vector<128x64xf32>
    %c0_4 = arith.constant 0 : index
    %c0_5 = arith.constant 0 : index
    %4 = vector.load %arg3[%c0_4, %c0_5] : memref<1x64xf32, #tpu.memory_space<vmem>>, vector<1x64xf32>
    %5 = vector.broadcast %4 : vector<1x64xf32> to vector<128x64xf32>
    %6 = arith.addf %3, %5 : vector<128x64xf32>
    %cst_6 = arith.constant 5.000000e-01 : f32
    %7 = vector.broadcast %cst_6 : f32 to vector<128x64xf32>
    %8 = arith.mulf %7, %6 : vector<128x64xf32>
    %cst_7 = arith.constant 4.471500e-02 : f32
    %9 = vector.broadcast %cst_7 : f32 to vector<128x64xf32>
    %10 = arith.mulf %9, %6 : vector<128x64xf32>
    %11 = arith.mulf %10, %6 : vector<128x64xf32>
    %12 = arith.mulf %11, %6 : vector<128x64xf32>
    %13 = arith.addf %6, %12 : vector<128x64xf32>
    %cst_8 = arith.constant 0.797884583 : f32
    %14 = vector.broadcast %cst_8 : f32 to vector<128x64xf32>
    %15 = arith.mulf %14, %13 : vector<128x64xf32>
    %16 = math.tanh %15 : vector<128x64xf32>
    %cst_9 = arith.constant 1.000000e+00 : f32
    %17 = vector.broadcast %cst_9 : f32 to vector<128x64xf32>
    %18 = arith.addf %17, %16 : vector<128x64xf32>
    %19 = arith.mulf %8, %18 : vector<128x64xf32>
    %cst_10 = arith.constant 0.000000e+00 : f32
    %20 = vector.broadcast %cst_10 : f32 to vector<1x6x8x64xf32>
    %cst_11 = arith.constant 0.000000e+00 : f32
    %21 = vector.broadcast %cst_11 : f32 to vector<6x1x8x64xf32>
    %c0_12 = arith.constant 0 : index
    %c0_13 = arith.constant 0 : index
    %c0_14 = arith.constant 0 : index
    %c0_15 = arith.constant 0 : index
    %22 = vector.load %arg9[%c0_12, %c0_13, %c0_14, %c0_15] : memref<6x6x8x64xf32, #tpu.memory_space<vmem>>, vector<1x6x8x64xf32>
    tpu.vector_store %arg9[%c0_12, %c0_13, %c0_14, %c0_15], %20 {strides = array<i32>} : memref<6x6x8x64xf32, #tpu.memory_space<vmem>>, vector<1x6x8x64xf32>,
    %c5 = arith.constant 5 : index
    %c0_16 = arith.constant 0 : index
    %c0_17 = arith.constant 0 : index
    %c0_18 = arith.constant 0 : index
    %23 = vector.load %arg9[%c5, %c0_16, %c0_17, %c0_18] : memref<6x6x8x64xf32, #tpu.memory_space<vmem>>, vector<1x6x8x64xf32>
    tpu.vector_store %arg9[%c5, %c0_16, %c0_17, %c0_18], %20 {strides = array<i32>} : memref<6x6x8x64xf32, #tpu.memory_space<vmem>>, vector<1x6x8x64xf32>,
    %c0_19 = arith.constant 0 : index
    %c0_20 = arith.constant 0 : index
    %c0_21 = arith.constant 0 : index
    %c0_22 = arith.constant 0 : index
    %24 = vector.load %arg9[%c0_19, %c0_20, %c0_21, %c0_22] : memref<6x6x8x64xf32, #tpu.memory_space<vmem>>, vector<6x1x8x64xf32>
    tpu.vector_store %arg9[%c0_19, %c0_20, %c0_21, %c0_22], %21 {strides = array<i32>} : memref<6x6x8x64xf32, #tpu.memory_space<vmem>>, vector<6x1x8x64xf32>,
    %c0_23 = arith.constant 0 : index
    %c5_24 = arith.constant 5 : index
    %c0_25 = arith.constant 0 : index
    %c0_26 = arith.constant 0 : index
    %25 = vector.load %arg9[%c0_23, %c5_24, %c0_25, %c0_26] : memref<6x6x8x64xf32, #tpu.memory_space<vmem>>, vector<6x1x8x64xf32>
    tpu.vector_store %arg9[%c0_23, %c5_24, %c0_25, %c0_26], %21 {strides = array<i32>} : memref<6x6x8x64xf32, #tpu.memory_space<vmem>>, vector<6x1x8x64xf32>,
    %26 = vector.shape_cast %19 : vector<128x64xf32> to vector<4x4x8x64xf32>
    %c1 = arith.constant 1 : index
    %c1_27 = arith.constant 1 : index
    %c0_28 = arith.constant 0 : index
    %c0_29 = arith.constant 0 : index
    %27 = vector.load %arg9[%c1, %c1_27, %c0_28, %c0_29] : memref<6x6x8x64xf32, #tpu.memory_space<vmem>>, vector<4x4x8x64xf32>
    tpu.vector_store %arg9[%c1, %c1_27, %c0_28, %c0_29], %26 {strides = array<i32>} : memref<6x6x8x64xf32, #tpu.memory_space<vmem>>, vector<4x4x8x64xf32>,
    %c4 = arith.constant 4 : index
    %c0_30 = arith.constant 0 : index
    %28 = vector.load %arg4[%c4, %c0_30] : memref<9x64xf32, #tpu.memory_space<vmem>>, vector<1x64xf32>
    %29 = vector.shape_cast %28 : vector<1x64xf32> to vector<1x1x1x64xf32>
    %c1_31 = arith.constant 1 : index
    %c1_32 = arith.constant 1 : index
    %c0_33 = arith.constant 0 : index
    %c0_34 = arith.constant 0 : index
    %30 = vector.load %arg9[%c1_31, %c1_32, %c0_33, %c0_34] : memref<6x6x8x64xf32, #tpu.memory_space<vmem>>, vector<4x4x8x64xf32>
    %31 = vector.broadcast %29 : vector<1x1x1x64xf32> to vector<4x4x8x64xf32>
    %32 = arith.mulf %30, %31 : vector<4x4x8x64xf32>
    %c0_35 = arith.constant 0 : index
    %c0_36 = arith.constant 0 : index
    %33 = vector.load %arg5[%c0_35, %c0_36] : memref<1x64xf32, #tpu.memory_space<vmem>>, vector<1x64xf32>
    %34 = vector.shape_cast %33 : vector<1x64xf32> to vector<1x1x1x64xf32>
    %35 = vector.broadcast %34 : vector<1x1x1x64xf32> to vector<4x4x8x64xf32>
    %36 = arith.addf %32, %35 : vector<4x4x8x64xf32>
    %c0_37 = arith.constant 0 : index
    %c0_38 = arith.constant 0 : index
    %37 = vector.load %arg4[%c0_37, %c0_38] : memref<9x64xf32, #tpu.memory_space<vmem>>, vector<1x64xf32>
    %38 = vector.shape_cast %37 : vector<1x64xf32> to vector<1x1x1x64xf32>
    %c0_39 = arith.constant 0 : index
    %c0_40 = arith.constant 0 : index
    %c0_41 = arith.constant 0 : index
    %c0_42 = arith.constant 0 : index
    %39 = vector.load %arg9[%c0_39, %c0_40, %c0_41, %c0_42] : memref<6x6x8x64xf32, #tpu.memory_space<vmem>>, vector<4x4x8x64xf32>
    %40 = vector.broadcast %38 : vector<1x1x1x64xf32> to vector<4x4x8x64xf32>
    %41 = arith.mulf %39, %40 : vector<4x4x8x64xf32>
    %42 = arith.addf %36, %41 : vector<4x4x8x64xf32>
    %c1_43 = arith.constant 1 : index
    %c0_44 = arith.constant 0 : index
    %43 = vector.load %arg4[%c1_43, %c0_44] : memref<9x64xf32, #tpu.memory_space<vmem>>, vector<1x64xf32>
    %44 = vector.shape_cast %43 : vector<1x64xf32> to vector<1x1x1x64xf32>
    %c0_45 = arith.constant 0 : index
    %c1_46 = arith.constant 1 : index
    %c0_47 = arith.constant 0 : index
    %c0_48 = arith.constant 0 : index
    %45 = vector.load %arg9[%c0_45, %c1_46, %c0_47, %c0_48] : memref<6x6x8x64xf32, #tpu.memory_space<vmem>>, vector<4x4x8x64xf32>
    %46 = vector.broadcast %44 : vector<1x1x1x64xf32> to vector<4x4x8x64xf32>
    %47 = arith.mulf %45, %46 : vector<4x4x8x64xf32>
    %48 = arith.addf %42, %47 : vector<4x4x8x64xf32>
    %c2 = arith.constant 2 : index
    %c0_49 = arith.constant 0 : index
    %49 = vector.load %arg4[%c2, %c0_49] : memref<9x64xf32, #tpu.memory_space<vmem>>, vector<1x64xf32>
    %50 = vector.shape_cast %49 : vector<1x64xf32> to vector<1x1x1x64xf32>
    %c0_50 = arith.constant 0 : index
    %c2_51 = arith.constant 2 : index
    %c0_52 = arith.constant 0 : index
    %c0_53 = arith.constant 0 : index
    %51 = vector.load %arg9[%c0_50, %c2_51, %c0_52, %c0_53] : memref<6x6x8x64xf32, #tpu.memory_space<vmem>>, vector<4x4x8x64xf32>
    %52 = vector.broadcast %50 : vector<1x1x1x64xf32> to vector<4x4x8x64xf32>
    %53 = arith.mulf %51, %52 : vector<4x4x8x64xf32>
    %54 = arith.addf %48, %53 : vector<4x4x8x64xf32>
    %c3 = arith.constant 3 : index
    %c0_54 = arith.constant 0 : index
    %55 = vector.load %arg4[%c3, %c0_54] : memref<9x64xf32, #tpu.memory_space<vmem>>, vector<1x64xf32>
    %56 = vector.shape_cast %55 : vector<1x64xf32> to vector<1x1x1x64xf32>
    %c1_55 = arith.constant 1 : index
    %c0_56 = arith.constant 0 : index
    %c0_57 = arith.constant 0 : index
    %c0_58 = arith.constant 0 : index
    %57 = vector.load %arg9[%c1_55, %c0_56, %c0_57, %c0_58] : memref<6x6x8x64xf32, #tpu.memory_space<vmem>>, vector<4x4x8x64xf32>
    %58 = vector.broadcast %56 : vector<1x1x1x64xf32> to vector<4x4x8x64xf32>
    %59 = arith.mulf %57, %58 : vector<4x4x8x64xf32>
    %60 = arith.addf %54, %59 : vector<4x4x8x64xf32>
    %c5_59 = arith.constant 5 : index
    %c0_60 = arith.constant 0 : index
    %61 = vector.load %arg4[%c5_59, %c0_60] : memref<9x64xf32, #tpu.memory_space<vmem>>, vector<1x64xf32>
    %62 = vector.shape_cast %61 : vector<1x64xf32> to vector<1x1x1x64xf32>
    %c1_61 = arith.constant 1 : index
    %c2_62 = arith.constant 2 : index
    %c0_63 = arith.constant 0 : index
    %c0_64 = arith.constant 0 : index
    %63 = vector.load %arg9[%c1_61, %c2_62, %c0_63, %c0_64] : memref<6x6x8x64xf32, #tpu.memory_space<vmem>>, vector<4x4x8x64xf32>
    %64 = vector.broadcast %62 : vector<1x1x1x64xf32> to vector<4x4x8x64xf32>
    %65 = arith.mulf %63, %64 : vector<4x4x8x64xf32>
    %66 = arith.addf %60, %65 : vector<4x4x8x64xf32>
    %c6 = arith.constant 6 : index
    %c0_65 = arith.constant 0 : index
    %67 = vector.load %arg4[%c6, %c0_65] : memref<9x64xf32, #tpu.memory_space<vmem>>, vector<1x64xf32>
    %68 = vector.shape_cast %67 : vector<1x64xf32> to vector<1x1x1x64xf32>
    %c2_66 = arith.constant 2 : index
    %c0_67 = arith.constant 0 : index
    %c0_68 = arith.constant 0 : index
    %c0_69 = arith.constant 0 : index
    %69 = vector.load %arg9[%c2_66, %c0_67, %c0_68, %c0_69] : memref<6x6x8x64xf32, #tpu.memory_space<vmem>>, vector<4x4x8x64xf32>
    %70 = vector.broadcast %68 : vector<1x1x1x64xf32> to vector<4x4x8x64xf32>
    %71 = arith.mulf %69, %70 : vector<4x4x8x64xf32>
    %72 = arith.addf %66, %71 : vector<4x4x8x64xf32>
    %c7 = arith.constant 7 : index
    %c0_70 = arith.constant 0 : index
    %73 = vector.load %arg4[%c7, %c0_70] : memref<9x64xf32, #tpu.memory_space<vmem>>, vector<1x64xf32>
    %74 = vector.shape_cast %73 : vector<1x64xf32> to vector<1x1x1x64xf32>
    %c2_71 = arith.constant 2 : index
    %c1_72 = arith.constant 1 : index
    %c0_73 = arith.constant 0 : index
    %c0_74 = arith.constant 0 : index
    %75 = vector.load %arg9[%c2_71, %c1_72, %c0_73, %c0_74] : memref<6x6x8x64xf32, #tpu.memory_space<vmem>>, vector<4x4x8x64xf32>
    %76 = vector.broadcast %74 : vector<1x1x1x64xf32> to vector<4x4x8x64xf32>
    %77 = arith.mulf %75, %76 : vector<4x4x8x64xf32>
    %78 = arith.addf %72, %77 : vector<4x4x8x64xf32>
    %c8 = arith.constant 8 : index
    %c0_75 = arith.constant 0 : index
    %79 = vector.load %arg4[%c8, %c0_75] : memref<9x64xf32, #tpu.memory_space<vmem>>, vector<1x64xf32>
    %80 = vector.shape_cast %79 : vector<1x64xf32> to vector<1x1x1x64xf32>
    %c2_76 = arith.constant 2 : index
    %c2_77 = arith.constant 2 : index
    %c0_78 = arith.constant 0 : index
    %c0_79 = arith.constant 0 : index
    %81 = vector.load %arg9[%c2_76, %c2_77, %c0_78, %c0_79] : memref<6x6x8x64xf32, #tpu.memory_space<vmem>>, vector<4x4x8x64xf32>
    %82 = vector.broadcast %80 : vector<1x1x1x64xf32> to vector<4x4x8x64xf32>
    %83 = arith.mulf %81, %82 : vector<4x4x8x64xf32>
    %84 = arith.addf %78, %83 : vector<4x4x8x64xf32>
    %cst_80 = arith.constant 5.000000e-01 : f32
    %85 = vector.broadcast %cst_80 : f32 to vector<4x4x8x64xf32>
    %86 = arith.mulf %85, %84 : vector<4x4x8x64xf32>
    %cst_81 = arith.constant 4.471500e-02 : f32
    %87 = vector.broadcast %cst_81 : f32 to vector<4x4x8x64xf32>
    %88 = arith.mulf %87, %84 : vector<4x4x8x64xf32>
    %89 = arith.mulf %88, %84 : vector<4x4x8x64xf32>
    %90 = arith.mulf %89, %84 : vector<4x4x8x64xf32>
    %91 = arith.addf %84, %90 : vector<4x4x8x64xf32>
    %cst_82 = arith.constant 0.797884583 : f32
    %92 = vector.broadcast %cst_82 : f32 to vector<4x4x8x64xf32>
    %93 = arith.mulf %92, %91 : vector<4x4x8x64xf32>
    %94 = math.tanh %93 : vector<4x4x8x64xf32>
    %cst_83 = arith.constant 1.000000e+00 : f32
    %95 = vector.broadcast %cst_83 : f32 to vector<4x4x8x64xf32>
    %96 = arith.addf %95, %94 : vector<4x4x8x64xf32>
    %97 = arith.mulf %86, %96 : vector<4x4x8x64xf32>
    %98 = vector.shape_cast %97 : vector<4x4x8x64xf32> to vector<128x64xf32>
    %c0_84 = arith.constant 0 : index
    %c0_85 = arith.constant 0 : index
    %99 = vector.load %arg6[%c0_84, %c0_85] : memref<64x32xf32, #tpu.memory_space<vmem>>, vector<64x32xf32>
    %cst_86 = arith.constant dense<0.000000e+00> : vector<128x32xf32>
    %100 = tpu.matmul %98, %99, %cst_86 {dimension_numbers = #tpu.dot_dimension_numbers<[1], [0], [0], [1], [0, 0, 1, 1], [], []>} : vector<128x64xf32>, vector<64x32xf32>, vector<128x32xf32> -> vector<128x32xf32>
    %c0_87 = arith.constant 0 : index
    %c0_88 = arith.constant 0 : index
    %101 = vector.load %arg7[%c0_87, %c0_88] : memref<1x32xf32, #tpu.memory_space<vmem>>, vector<1x32xf32>
    %102 = vector.broadcast %101 : vector<1x32xf32> to vector<128x32xf32>
    %103 = arith.addf %100, %102 : vector<128x32xf32>
    %104 = vector.shape_cast %103 : vector<128x32xf32> to vector<16x8x32xf32>
    %c0_89 = arith.constant 0 : index
    %c0_90 = arith.constant 0 : index
    %c0_91 = arith.constant 0 : index
    %105 = vector.load %arg8[%c0_89, %c0_90, %c0_91] : memref<16x8x32xf32, #tpu.memory_space<vmem>>, vector<16x8x32xf32>
    tpu.vector_store %arg8[%c0_89, %c0_90, %c0_91], %104 {strides = array<i32>} : memref<16x8x32xf32, #tpu.memory_space<vmem>>, vector<16x8x32xf32>,
    return
  }
  func.func @transform_0(%arg0: i32) -> (i32, i32, i32) {
    %c0_i32 = arith.constant 0 : i32
    %c0_i32_0 = arith.constant 0 : i32
    %c0_i32_1 = arith.constant 0 : i32
    return %c0_i32, %arg0, %c0_i32_0 : i32, i32, i32
  }
  func.func @transform_1(%arg0: i32) -> (i32, i32) {
    %c0_i32 = arith.constant 0 : i32
    %c0_i32_0 = arith.constant 0 : i32
    %c0_i32_1 = arith.constant 0 : i32
    return %c0_i32, %c0_i32_0 : i32, i32
  }
  func.func @transform_2(%arg0: i32) -> (i32, i32) {
    %c0_i32 = arith.constant 0 : i32
    %c0_i32_0 = arith.constant 0 : i32
    %c0_i32_1 = arith.constant 0 : i32
    return %c0_i32, %c0_i32_0 : i32, i32
  }
  func.func @transform_3(%arg0: i32) -> (i32, i32) {
    %c0_i32 = arith.constant 0 : i32
    %c0_i32_0 = arith.constant 0 : i32
    %c0_i32_1 = arith.constant 0 : i32
    return %c0_i32, %c0_i32_0 : i32, i32
  }
  func.func @transform_4(%arg0: i32) -> (i32, i32) {
    %c0_i32 = arith.constant 0 : i32
    %c0_i32_0 = arith.constant 0 : i32
    %c0_i32_1 = arith.constant 0 : i32
    return %c0_i32, %c0_i32_0 : i32, i32
  }
  func.func @transform_5(%arg0: i32) -> (i32, i32) {
    %c0_i32 = arith.constant 0 : i32
    %c0_i32_0 = arith.constant 0 : i32
    %c0_i32_1 = arith.constant 0 : i32
    return %c0_i32, %c0_i32_0 : i32, i32
  }
  func.func @transform_6(%arg0: i32) -> (i32, i32) {
    %c0_i32 = arith.constant 0 : i32
    %c0_i32_0 = arith.constant 0 : i32
    %c0_i32_1 = arith.constant 0 : i32
    return %c0_i32, %c0_i32_0 : i32, i32
  }
  func.func @transform_7(%arg0: i32) -> (i32, i32, i32) {
    %c0_i32 = arith.constant 0 : i32
    %c0_i32_0 = arith.constant 0 : i32
    %c0_i32_1 = arith.constant 0 : i32
    return %c0_i32, %arg0, %c0_i32_0 : i32, i32, i32
  }
}

</mosaic_0001>

<llo_original>
// kernel: tpu_custom_call.1
$region0: #{tpu_custom_call.1}
  #allocation0 [shape = 'u32[]', space=smem, size = 0x4, offset = 0x4, fixed_abs, tag = 'smem constant byte address 0x4 - core index']
  #allocation1 [shape = 'u32[72,128]{1,0:T(1,128)}', space=vmem, size = 0x9000, scoped, tag = 'internal scratch']
  #allocation2 [shape = 'f32[6,6,8,64]{3,2,1,0:T(8,128)}', space=vmem, size = 0x24000, scoped, tag = 'scratch operand']
  %s0 = inlined_call_operand.hbm [shape: f32[16,8,32], index: 0, kind: input, shape index: {}]
  %s1 = inlined_call_operand.vmem [shape: f32[32,64], index: 1, kind: input, shape index: {}]
  %s2 = inlined_call_operand.vmem [shape: f32[1,64], index: 2, kind: input, shape index: {}]
  %s3 = inlined_call_operand.vmem [shape: f32[9,64], index: 3, kind: input, shape index: {}]
  %s4 = inlined_call_operand.vmem [shape: f32[1,64], index: 4, kind: input, shape index: {}]
  %s5 = inlined_call_operand.vmem [shape: f32[64,32], index: 5, kind: input, shape index: {}]
  %s6 = inlined_call_operand.vmem [shape: f32[1,32], index: 6, kind: input, shape index: {}]
  %s7 = inlined_call_operand.hbm [shape: f32[16,8,32], index: 7, kind: output, shape index: {}]
  %s8 = sld [smem:[#allocation0]]
  $region42: #{tpu_custom_call.1} parent=0
    _
  %s10 = ssub.s32 1, %s8
  %s11 = scalar_select 0, %s10, %s8
  $region1: #{tpu_custom_call.1} parent=0
    #allocation3 [shape = 'u8[65536]{0}', space=vmem, size = 0x10000, scoped, tag = 'input window, operand 0, single buffered']
    #allocation4 [shape = 's32[1]{0}', space=sflag, size = 0x4, scoped, tag = 'scoped memory for tpu_custom_call.1']
    #allocation5 [shape = 's32[1]{0}', space=sflag, size = 0x4, scoped, tag = 'scoped memory for tpu_custom_call.1']
    #allocation6 [shape = 'u8[65536]{0}', space=vmem, size = 0x10000, scoped, tag = 'output window, operand 0, single buffered']
    %12 = vsyncpa [#allocation4], 0
    %13 = vsyncpa [#allocation5], 0
    // Predicated region
    $region2: #{tpu_custom_call.1} parent=1 // pred_check
      _
    $region3: #{tpu_custom_call.1} parent=1 // pred_check_branch
      %15 = sbr.rel (0) target = $region5
    $region4: #{tpu_custom_call.1} parent=1 // pred_region
      %17 = vsyncadd [#allocation4], 0
      %s18 = sshll.u32 %s0, 4
      %s19 = int_to_ptr.hbm [resolvable:$true] %s18
      %s20 = sshll.u32 [#allocation3], 4
      %s21 = int_to_ptr.vmem [resolvable:$true] %s20
      %26 = dma.hbm_to_vmem [thread:$0]  %s19, 2048, %s21, [#allocation4], 128, 128, 8
    $region5: #{tpu_custom_call.1} parent=1 // pred_fallthru
      _
    // Predicated region
    $region6: #{tpu_custom_call.1} parent=1 // pred_check
      _
    $region7: #{tpu_custom_call.1} parent=1 // pred_check_branch
      %28 = sbr.rel (0) target = $region9
    $region8: #{tpu_custom_call.1} parent=1 // pred_region
      _
    $region9: #{tpu_custom_call.1} parent=1 // pred_fallthru
      _
    // Predicated region
    $region10: #{tpu_custom_call.1} parent=1 // pred_check
      _
    $region11: #{tpu_custom_call.1} parent=1 // pred_check_branch
      %30 = sbr.rel (0) target = $region13
    $region12: #{tpu_custom_call.1} parent=1 // pred_region
      _
    $region13: #{tpu_custom_call.1} parent=1 // pred_fallthru
      _
    // Predicated region
    $region14: #{tpu_custom_call.1} parent=1 // pred_check
      _
    $region15: #{tpu_custom_call.1} parent=1 // pred_check_branch
      %32 = sbr.rel (0) target = $region17
    $region16: #{tpu_custom_call.1} parent=1 // pred_region
      _
    $region17: #{tpu_custom_call.1} parent=1 // pred_fallthru
      _
    // Predicated region
    $region18: #{tpu_custom_call.1} parent=1 // pred_check
      _
    $region19: #{tpu_custom_call.1} parent=1 // pred_check_branch
      %34 = sbr.rel (0) target = $region21
    $region20: #{tpu_custom_call.1} parent=1 // pred_region
      _
    $region21: #{tpu_custom_call.1} parent=1 // pred_fallthru
      _
    // Predicated region
    $region22: #{tpu_custom_call.1} parent=1 // pred_check
      _
    $region23: #{tpu_custom_call.1} parent=1 // pred_check_branch
      %36 = sbr.rel (0) target = $region25
    $region24: #{tpu_custom_call.1} parent=1 // pred_region
      _
    $region25: #{tpu_custom_call.1} parent=1 // pred_fallthru
      _
    // Predicated region
    $region26: #{tpu_custom_call.1} parent=1 // pred_check
      _
    $region27: #{tpu_custom_call.1} parent=1 // pred_check_branch
      %38 = sbr.rel (0) target = $region29
    $region28: #{tpu_custom_call.1} parent=1 // pred_region
      _
    $region29: #{tpu_custom_call.1} parent=1 // pred_fallthru
      _
    // Predicated region
    $region30: #{tpu_custom_call.1} parent=1 // pred_check
      _
    $region31: #{tpu_custom_call.1} parent=1 // pred_check_branch
      %40 = sbr.rel (0) target = $region33
    $region32: #{tpu_custom_call.1} parent=1 // pred_region
      %42 = dma.done [#allocation4], 2048
    $region33: #{tpu_custom_call.1} parent=1 // pred_fallthru
      _
    %v43 = vld [vmem:[#allocation3] sm:$0xff]
    %v44 = vld [vmem:[#allocation3 + $0x8] sm:$0xff]
    %v45 = vld [vmem:[#allocation3 + $0x10] sm:$0xff]
    %v46 = vld [vmem:[#allocation3 + $0x18] sm:$0xff]
    %v47 = vld [vmem:[#allocation3 + $0x20] sm:$0xff]
    %v48 = vld [vmem:[#allocation3 + $0x28] sm:$0xff]
    %v49 = vld [vmem:[#allocation3 + $0x30] sm:$0xff]
    %v50 = vld [vmem:[#allocation3 + $0x38] sm:$0xff]
    %v51 = vld [vmem:[#allocation3 + $0x40] sm:$0xff]
    %v52 = vld [vmem:[#allocation3 + $0x48] sm:$0xff]
    %v53 = vld [vmem:[#allocation3 + $0x50] sm:$0xff]
    %v54 = vld [vmem:[#allocation3 + $0x58] sm:$0xff]
    %v55 = vld [vmem:[#allocation3 + $0x60] sm:$0xff]
    %v56 = vld [vmem:[#allocation3 + $0x68] sm:$0xff]
    %v57 = vld [vmem:[#allocation3 + $0x70] sm:$0xff]
    %v58 = vld [vmem:[#allocation3 + $0x78] sm:$0xff]
    %v59 = vld [vmem:[%s1] sm:$0xff]
    %v60 = vld [vmem:[%s1 + $0x8] sm:$0xff]
    %v61 = vld [vmem:[%s1 + $0x10] sm:$0xff]
    %v62 = vld [vmem:[%s1 + $0x18] sm:$0xff]
    %v63 = vld [vmem:[%s2] sm:$0x1]
    %v65 = vperm.slane %v63, 0
    %vm67 = vcmask 261120
    %v69 = vsel %vm67, %v43, 0
    %v72 = vsel %vm67, %v44, 0
    %v75 = vsel %vm67, %v45, 0
    %v78 = vsel %vm67, %v46, 0
    %v81 = vsel %vm67, %v47, 0
    %v84 = vsel %vm67, %v48, 0
    %v87 = vsel %vm67, %v49, 0
    %v90 = vsel %vm67, %v50, 0
    %v93 = vsel %vm67, %v51, 0
    %v96 = vsel %vm67, %v52, 0
    %v99 = vsel %vm67, %v53, 0
    %v102 = vsel %vm67, %v54, 0
    %v105 = vsel %vm67, %v55, 0
    %v108 = vsel %vm67, %v56, 0
    %v111 = vsel %vm67, %v57, 0
    %v114 = vsel %vm67, %v58, 0
    %116 = vmatpush.msra.mxu0 0.0
    %117 = vmatpush.msra.mxu0 0.0
    %118 = vmatpush.msra.mxu0 0.0
    %119 = vmatpush.msra.mxu0 0.0
    %120 = vmatpush.msra.mxu0 0.0
    %121 = vmatpush.msra.mxu0 0.0
    %122 = vmatpush.msra.mxu0 0.0
    %123 = vmatpush.msra.mxu0 0.0
    %124 = vmatpush.msra.mxu0 0.0
    %125 = vmatpush.msra.mxu0 0.0
    %126 = vmatpush.msra.mxu0 0.0
    %127 = vmatpush.msra.mxu0 0.0
    %128 = vmatpush.msra.mxu0 %v62
    %129 = vmatpush.msra.mxu0 %v61
    %130 = vmatpush.msra.mxu0 %v60
    %131 = vmatpush.msra.mxu0 %v59
    %132 = vmatmul.f32.gmra.mxu0 %v69
    %v133 = vpop.f32.mrf.mxu0
    %v134 = vadd.f32 %v65, %v133
    %135 = vmatmul.f32.gmra.mxu0 %v72
    %v136 = vpop.f32.mrf.mxu0
    %v137 = vadd.f32 %v65, %v136
    %138 = vmatmul.f32.gmra.mxu0 %v75
    %v139 = vpop.f32.mrf.mxu0
    %v140 = vadd.f32 %v65, %v139
    %141 = vmatmul.f32.gmra.mxu0 %v78
    %v142 = vpop.f32.mrf.mxu0
    %v143 = vadd.f32 %v65, %v142
    %144 = vmatmul.f32.gmra.mxu0 %v81
    %v145 = vpop.f32.mrf.mxu0
    %v146 = vadd.f32 %v65, %v145
    %147 = vmatmul.f32.gmra.mxu0 %v84
    %v148 = vpop.f32.mrf.mxu0
    %v149 = vadd.f32 %v65, %v148
    %150 = vmatmul.f32.gmra.mxu0 %v87
    %v151 = vpop.f32.mrf.mxu0
    %v152 = vadd.f32 %v65, %v151
    %153 = vmatmul.f32.gmra.mxu0 %v90
    %v154 = vpop.f32.mrf.mxu0
    %v155 = vadd.f32 %v65, %v154
    %156 = vmatmul.f32.gmra.mxu0 %v93
    %v157 = vpop.f32.mrf.mxu0
    %v158 = vadd.f32 %v65, %v157
    %159 = vmatmul.f32.gmra.mxu0 %v96
    %v160 = vpop.f32.mrf.mxu0
    %v161 = vadd.f32 %v65, %v160
    %162 = vmatmul.f32.gmra.mxu0 %v99
    %v163 = vpop.f32.mrf.mxu0
    %v164 = vadd.f32 %v65, %v163
    %165 = vmatmul.f32.gmra.mxu0 %v102
    %v166 = vpop.f32.mrf.mxu0
    %v167 = vadd.f32 %v65, %v166
    %168 = vmatmul.f32.gmra.mxu0 %v105
    %v169 = vpop.f32.mrf.mxu0
    %v170 = vadd.f32 %v65, %v169
    %171 = vmatmul.f32.gmra.mxu0 %v108
    %v172 = vpop.f32.mrf.mxu0
    %v173 = vadd.f32 %v65, %v172
    %174 = vmatmul.f32.gmra.mxu0 %v111
    %v175 = vpop.f32.mrf.mxu0
    %v176 = vadd.f32 %v65, %v175
    %177 = vmatmul.f32.gmra.mxu0 %v114
    %v178 = vpop.f32.mrf.mxu0
    %v179 = vadd.f32 %v65, %v178
    %180 = vdwg.mxu0
    %v181 = vmul.f32 %v134, 0.5
    %v182 = vmul.f32 %v137, 0.5
    %v183 = vmul.f32 %v140, 0.5
    %v184 = vmul.f32 %v143, 0.5
    %v185 = vmul.f32 %v146, 0.5
    %v186 = vmul.f32 %v149, 0.5
    %v187 = vmul.f32 %v152, 0.5
    %v188 = vmul.f32 %v155, 0.5
    %v189 = vmul.f32 %v158, 0.5
    %v190 = vmul.f32 %v161, 0.5
    %v191 = vmul.f32 %v164, 0.5
    %v192 = vmul.f32 %v167, 0.5
    %v193 = vmul.f32 %v170, 0.5
    %v194 = vmul.f32 %v173, 0.5
    %v195 = vmul.f32 %v176, 0.5
    %v196 = vmul.f32 %v179, 0.5
    %v197 = vmul.f32 %v134, 0.044715
    %v198 = vmul.f32 %v137, 0.044715
    %v199 = vmul.f32 %v140, 0.044715
    %v200 = vmul.f32 %v143, 0.044715
    %v201 = vmul.f32 %v146, 0.044715
    %v202 = vmul.f32 %v149, 0.044715
    %v203 = vmul.f32 %v152, 0.044715
    %v204 = vmul.f32 %v155, 0.044715
    %v205 = vmul.f32 %v158, 0.044715
    %v206 = vmul.f32 %v161, 0.044715
    %v207 = vmul.f32 %v164, 0.044715
    %v208 = vmul.f32 %v167, 0.044715
    %v209 = vmul.f32 %v170, 0.044715
    %v210 = vmul.f32 %v173, 0.044715
    %v211 = vmul.f32 %v176, 0.044715
    %v212 = vmul.f32 %v179, 0.044715
    %v213 = vmul.f32 %v197, %v134
    %v214 = vmul.f32 %v198, %v137
    %v215 = vmul.f32 %v199, %v140
    %v216 = vmul.f32 %v200, %v143
    %v217 = vmul.f32 %v201, %v146
    %v218 = vmul.f32 %v202, %v149
    %v219 = vmul.f32 %v203, %v152
    %v220 = vmul.f32 %v204, %v155
    %v221 = vmul.f32 %v205, %v158
    %v222 = vmul.f32 %v206, %v161
    %v223 = vmul.f32 %v207, %v164
    %v224 = vmul.f32 %v208, %v167
    %v225 = vmul.f32 %v209, %v170
    %v226 = vmul.f32 %v210, %v173
    %v227 = vmul.f32 %v211, %v176
    %v228 = vmul.f32 %v212, %v179
    %v229 = vmul.f32 %v213, %v134
    %v230 = vmul.f32 %v214, %v137
    %v231 = vmul.f32 %v215, %v140
    %v232 = vmul.f32 %v216, %v143
    %v233 = vmul.f32 %v217, %v146
    %v234 = vmul.f32 %v218, %v149
    %v235 = vmul.f32 %v219, %v152
    %v236 = vmul.f32 %v220, %v155
    %v237 = vmul.f32 %v221, %v158
    %v238 = vmul.f32 %v222, %v161
    %v239 = vmul.f32 %v223, %v164
    %v240 = vmul.f32 %v224, %v167
    %v241 = vmul.f32 %v225, %v170
    %v242 = vmul.f32 %v226, %v173
    %v243 = vmul.f32 %v227, %v176
    %v244 = vmul.f32 %v228, %v179
    %v245 = vadd.f32 %v134, %v229
    %v246 = vadd.f32 %v137, %v230
    %v247 = vadd.f32 %v140, %v231
    %v248 = vadd.f32 %v143, %v232
    %v249 = vadd.f32 %v146, %v233
    %v250 = vadd.f32 %v149, %v234
    %v251 = vadd.f32 %v152, %v235
    %v252 = vadd.f32 %v155, %v236
    %v253 = vadd.f32 %v158, %v237
    %v254 = vadd.f32 %v161, %v238
    %v255 = vadd.f32 %v164, %v239
    %v256 = vadd.f32 %v167, %v240
    %v257 = vadd.f32 %v170, %v241
    %v258 = vadd.f32 %v173, %v242
    %v259 = vadd.f32 %v176, %v243
    %v260 = vadd.f32 %v179, %v244
    %v261 = vmul.f32 %v245, 0.7978846
    %v262 = vmul.f32 %v246, 0.7978846
    %v263 = vmul.f32 %v247, 0.7978846
    %v264 = vmul.f32 %v248, 0.7978846
    %v265 = vmul.f32 %v249, 0.7978846
    %v266 = vmul.f32 %v250, 0.7978846
    %v267 = vmul.f32 %v251, 0.7978846
    %v268 = vmul.f32 %v252, 0.7978846
    %v269 = vmul.f32 %v253, 0.7978846
    %v270 = vmul.f32 %v254, 0.7978846
    %v271 = vmul.f32 %v255, 0.7978846
    %v272 = vmul.f32 %v256, 0.7978846
    %v273 = vmul.f32 %v257, 0.7978846
    %v274 = vmul.f32 %v258, 0.7978846
    %v275 = vmul.f32 %v259, 0.7978846
    %v276 = vmul.f32 %v260, 0.7978846
    %v277 = vtanh.pop %v261
    %v278 = vtanh.pop %v262
    %v279 = vtanh.pop %v263
    %v280 = vtanh.pop %v264
    %v281 = vtanh.pop %v265
    %v282 = vtanh.pop %v266
    %v283 = vtanh.pop %v267
    %v284 = vtanh.pop %v268
    %v285 = vtanh.pop %v269
    %v286 = vtanh.pop %v270
    %v287 = vtanh.pop %v271
    %v288 = vtanh.pop %v272
    %v289 = vtanh.pop %v273
    %v290 = vtanh.pop %v274
    %v291 = vtanh.pop %v275
    %v292 = vtanh.pop %v276
    %v293 = vadd.f32 %v277, 1.0
    %v294 = vadd.f32 %v278, 1.0
    %v295 = vadd.f32 %v279, 1.0
    %v296 = vadd.f32 %v280, 1.0
    %v297 = vadd.f32 %v281, 1.0
    %v298 = vadd.f32 %v282, 1.0
    %v299 = vadd.f32 %v283, 1.0
    %v300 = vadd.f32 %v284, 1.0
    %v301 = vadd.f32 %v285, 1.0
    %v302 = vadd.f32 %v286, 1.0
    %v303 = vadd.f32 %v287, 1.0
    %v304 = vadd.f32 %v288, 1.0
    %v305 = vadd.f32 %v289, 1.0
    %v306 = vadd.f32 %v290, 1.0
    %v307 = vadd.f32 %v291, 1.0
    %v308 = vadd.f32 %v292, 1.0
    %v309 = vmul.f32 %v181, %v293
    %v310 = vmul.f32 %v182, %v294
    %v311 = vmul.f32 %v183, %v295
    %v312 = vmul.f32 %v184, %v296
    %v313 = vmul.f32 %v185, %v297
    %v314 = vmul.f32 %v186, %v298
    %v315 = vmul.f32 %v187, %v299
    %v316 = vmul.f32 %v188, %v300
    %v317 = vmul.f32 %v189, %v301
    %v318 = vmul.f32 %v190, %v302
    %v319 = vmul.f32 %v191, %v303
    %v320 = vmul.f32 %v192, %v304
    %v321 = vmul.f32 %v193, %v305
    %v322 = vmul.f32 %v194, %v306
    %v323 = vmul.f32 %v195, %v307
    %v324 = vmul.f32 %v196, %v308
    %vm325 = vcmask 523264
    %326 = vst.msk [vmem:[#allocation2] sm:$0xff] %vm325, 0.0
    %327 = vst.msk [vmem:[#allocation2 + $0x8] sm:$0xff] %vm325, 0.0
    %328 = vst.msk [vmem:[#allocation2 + $0x10] sm:$0xff] %vm325, 0.0
    %329 = vst.msk [vmem:[#allocation2 + $0x18] sm:$0xff] %vm325, 0.0
    %330 = vst.msk [vmem:[#allocation2 + $0x20] sm:$0xff] %vm325, 0.0
    %331 = vst.msk [vmem:[#allocation2 + $0x28] sm:$0xff] %vm325, 0.0
    %s332 = scalar_lea.vmem [#allocation2], 240
    %333 = vst.msk [vmem:[%s332] sm:$0xff] %vm325, 0.0
    %334 = vst.msk [vmem:[%s332 + $0x8] sm:$0xff] %vm325, 0.0
    %335 = vst.msk [vmem:[%s332 + $0x10] sm:$0xff] %vm325, 0.0
    %336 = vst.msk [vmem:[%s332 + $0x18] sm:$0xff] %vm325, 0.0
    %337 = vst.msk [vmem:[%s332 + $0x20] sm:$0xff] %vm325, 0.0
    %338 = vst.msk [vmem:[%s332 + $0x28] sm:$0xff] %vm325, 0.0
    %339 = vst.msk [vmem:[#allocation2] sm:$0xff] %vm325, 0.0
    %340 = vst.msk [vmem:[#allocation2 + $0x30] sm:$0xff] %vm325, 0.0
    %341 = vst.msk [vmem:[#allocation2 + $0x60] sm:$0xff] %vm325, 0.0
    %342 = vst.msk [vmem:[#allocation2 + $0x90] sm:$0xff] %vm325, 0.0
    %343 = vst.msk [vmem:[#allocation2 + $0xc0] sm:$0xff] %vm325, 0.0
    %344 = vst.msk [vmem:[#allocation2 + $0xf0] sm:$0xff] %vm325, 0.0
    %s345 = scalar_lea.vmem [#allocation2], 40
    %346 = vst.msk [vmem:[%s345] sm:$0xff] %vm325, 0.0
    %347 = vst.msk [vmem:[%s345 + $0x30] sm:$0xff] %vm325, 0.0
    %348 = vst.msk [vmem:[%s345 + $0x60] sm:$0xff] %vm325, 0.0
    %349 = vst.msk [vmem:[%s345 + $0x90] sm:$0xff] %vm325, 0.0
    %350 = vst.msk [vmem:[%s345 + $0xc0] sm:$0xff] %vm325, 0.0
    %351 = vst.msk [vmem:[%s345 + $0xf0] sm:$0xff] %vm325, 0.0
    %s352 = scalar_lea.vmem [#allocation2], 56
    %353 = vst.msk [vmem:[%s352] sm:$0xff] %vm325, %v309
    %354 = vst.msk [vmem:[%s352 + $0x8] sm:$0xff] %vm325, %v310
    %355 = vst.msk [vmem:[%s352 + $0x10] sm:$0xff] %vm325, %v311
    %356 = vst.msk [vmem:[%s352 + $0x18] sm:$0xff] %vm325, %v312
    %357 = vst.msk [vmem:[%s352 + $0x30] sm:$0xff] %vm325, %v313
    %358 = vst.msk [vmem:[%s352 + $0x38] sm:$0xff] %vm325, %v314
    %359 = vst.msk [vmem:[%s352 + $0x40] sm:$0xff] %vm325, %v315
    %360 = vst.msk [vmem:[%s352 + $0x48] sm:$0xff] %vm325, %v316
    %361 = vst.msk [vmem:[%s352 + $0x60] sm:$0xff] %vm325, %v317
    %362 = vst.msk [vmem:[%s352 + $0x68] sm:$0xff] %vm325, %v318
    %363 = vst.msk [vmem:[%s352 + $0x70] sm:$0xff] %vm325, %v319
    %364 = vst.msk [vmem:[%s352 + $0x78] sm:$0xff] %vm325, %v320
    %365 = vst.msk [vmem:[%s352 + $0x90] sm:$0xff] %vm325, %v321
    %366 = vst.msk [vmem:[%s352 + $0x98] sm:$0xff] %vm325, %v322
    %367 = vst.msk [vmem:[%s352 + $0xa0] sm:$0xff] %vm325, %v323
    %368 = vst.msk [vmem:[%s352 + $0xa8] sm:$0xff] %vm325, %v324
    %v369 = vld [vmem:[%s3 + $0x4] sm:$0x1]
    %v370 = vld [vmem:[%s352] sm:$0xff]
    %v371 = vld [vmem:[%s352 + $0x8] sm:$0xff]
    %v372 = vld [vmem:[%s352 + $0x10] sm:$0xff]
    %v373 = vld [vmem:[%s352 + $0x18] sm:$0xff]
    %v374 = vld [vmem:[%s352 + $0x30] sm:$0xff]
    %v375 = vld [vmem:[%s352 + $0x38] sm:$0xff]
    %v376 = vld [vmem:[%s352 + $0x40] sm:$0xff]
    %v377 = vld [vmem:[%s352 + $0x48] sm:$0xff]
    %v378 = vld [vmem:[%s352 + $0x60] sm:$0xff]
    %v379 = vld [vmem:[%s352 + $0x68] sm:$0xff]
    %v380 = vld [vmem:[%s352 + $0x70] sm:$0xff]
    %v381 = vld [vmem:[%s352 + $0x78] sm:$0xff]
    %v382 = vld [vmem:[%s352 + $0x90] sm:$0xff]
    %v383 = vld [vmem:[%s352 + $0x98] sm:$0xff]
    %v384 = vld [vmem:[%s352 + $0xa0] sm:$0xff]
    %v385 = vld [vmem:[%s352 + $0xa8] sm:$0xff]
    %v386 = vperm.slane %v369, 0
    %v387 = vmul.f32 %v370, %v386
    %v388 = vmul.f32 %v371, %v386
    %v389 = vmul.f32 %v372, %v386
    %v390 = vmul.f32 %v373, %v386
    %v391 = vmul.f32 %v374, %v386
    %v392 = vmul.f32 %v375, %v386
    %v393 = vmul.f32 %v376, %v386
    %v394 = vmul.f32 %v377, %v386
    %v395 = vmul.f32 %v378, %v386
    %v396 = vmul.f32 %v379, %v386
    %v397 = vmul.f32 %v380, %v386
    %v398 = vmul.f32 %v381, %v386
    %v399 = vmul.f32 %v382, %v386
    %v400 = vmul.f32 %v383, %v386
    %v401 = vmul.f32 %v384, %v386
    %v402 = vmul.f32 %v385, %v386
    %v403 = vld [vmem:[%s4] sm:$0x1]
    %v405 = vperm.slane %v403, 0
    %v407 = vadd.f32 %v387, %v405
    %v408 = vadd.f32 %v388, %v405
    %v409 = vadd.f32 %v389, %v405
    %v410 = vadd.f32 %v390, %v405
    %v411 = vadd.f32 %v391, %v405
    %v412 = vadd.f32 %v392, %v405
    %v413 = vadd.f32 %v393, %v405
    %v414 = vadd.f32 %v394, %v405
    %v415 = vadd.f32 %v395, %v405
    %v416 = vadd.f32 %v396, %v405
    %v417 = vadd.f32 %v397, %v405
    %v418 = vadd.f32 %v398, %v405
    %v419 = vadd.f32 %v399, %v405
    %v420 = vadd.f32 %v400, %v405
    %v421 = vadd.f32 %v401, %v405
    %v422 = vadd.f32 %v402, %v405
    %v423 = vld [vmem:[%s3] sm:$0x1]
    %v424 = vld [vmem:[#allocation2] sm:$0xff]
    %v425 = vld [vmem:[#allocation2 + $0x8] sm:$0xff]
    %v426 = vld [vmem:[#allocation2 + $0x10] sm:$0xff]
    %v427 = vld [vmem:[#allocation2 + $0x18] sm:$0xff]
    %v428 = vld [vmem:[#allocation2 + $0x30] sm:$0xff]
    %v429 = vld [vmem:[#allocation2 + $0x38] sm:$0xff]
    %v430 = vld [vmem:[#allocation2 + $0x40] sm:$0xff]
    %v431 = vld [vmem:[#allocation2 + $0x48] sm:$0xff]
    %v432 = vld [vmem:[#allocation2 + $0x60] sm:$0xff]
    %v433 = vld [vmem:[#allocation2 + $0x68] sm:$0xff]
    %v434 = vld [vmem:[#allocation2 + $0x70] sm:$0xff]
    %v435 = vld [vmem:[#allocation2 + $0x78] sm:$0xff]
    %v436 = vld [vmem:[#allocation2 + $0x90] sm:$0xff]
    %v437 = vld [vmem:[#allocation2 + $0x98] sm:$0xff]
    %v438 = vld [vmem:[#allocation2 + $0xa0] sm:$0xff]
    %v439 = vld [vmem:[#allocation2 + $0xa8] sm:$0xff]
    %v440 = vperm.slane %v423, 0
    %v441 = vmul.f32 %v424, %v440
    %v442 = vmul.f32 %v425, %v440
    %v443 = vmul.f32 %v426, %v440
    %v444 = vmul.f32 %v427, %v440
    %v445 = vmul.f32 %v428, %v440
    %v446 = vmul.f32 %v429, %v440
    %v447 = vmul.f32 %v430, %v440
    %v448 = vmul.f32 %v431, %v440
    %v449 = vmul.f32 %v432, %v440
    %v450 = vmul.f32 %v433, %v440
    %v451 = vmul.f32 %v434, %v440
    %v452 = vmul.f32 %v435, %v440
    %v453 = vmul.f32 %v436, %v440
    %v454 = vmul.f32 %v437, %v440
    %v455 = vmul.f32 %v438, %v440
    %v456 = vmul.f32 %v439, %v440
    %v457 = vadd.f32 %v407, %v441
    %v458 = vadd.f32 %v408, %v442
    %v459 = vadd.f32 %v409, %v443
    %v460 = vadd.f32 %v410, %v444
    %v461 = vadd.f32 %v411, %v445
    %v462 = vadd.f32 %v412, %v446
    %v463 = vadd.f32 %v413, %v447
    %v464 = vadd.f32 %v414, %v448
    %v465 = vadd.f32 %v415, %v449
    %v466 = vadd.f32 %v416, %v450
    %v467 = vadd.f32 %v417, %v451
    %v468 = vadd.f32 %v418, %v452
    %v469 = vadd.f32 %v419, %v453
    %v470 = vadd.f32 %v420, %v454
    %v471 = vadd.f32 %v421, %v455
    %v472 = vadd.f32 %v422, %v456
    %v473 = vld [vmem:[%s3 + $0x1] sm:$0x1]
    %s474 = scalar_lea.vmem [#allocation2], 8
    %v475 = vld [vmem:[%s474] sm:$0xff]
    %v476 = vld [vmem:[%s474 + $0x8] sm:$0xff]
    %v477 = vld [vmem:[%s474 + $0x10] sm:$0xff]
    %v478 = vld [vmem:[%s474 + $0x18] sm:$0xff]
    %v479 = vld [vmem:[%s474 + $0x30] sm:$0xff]
    %v480 = vld [vmem:[%s474 + $0x38] sm:$0xff]
    %v481 = vld [vmem:[%s474 + $0x40] sm:$0xff]
    %v482 = vld [vmem:[%s474 + $0x48] sm:$0xff]
    %v483 = vld [vmem:[%s474 + $0x60] sm:$0xff]
    %v484 = vld [vmem:[%s474 + $0x68] sm:$0xff]
    %v485 = vld [vmem:[%s474 + $0x70] sm:$0xff]
    %v486 = vld [vmem:[%s474 + $0x78] sm:$0xff]
    %v487 = vld [vmem:[%s474 + $0x90] sm:$0xff]
    %v488 = vld [vmem:[%s474 + $0x98] sm:$0xff]
    %v489 = vld [vmem:[%s474 + $0xa0] sm:$0xff]
    %v490 = vld [vmem:[%s474 + $0xa8] sm:$0xff]
    %v491 = vperm.slane %v473, 0
    %v492 = vmul.f32 %v475, %v491
    %v493 = vmul.f32 %v476, %v491
    %v494 = vmul.f32 %v477, %v491
    %v495 = vmul.f32 %v478, %v491
    %v496 = vmul.f32 %v479, %v491
    %v497 = vmul.f32 %v480, %v491
    %v498 = vmul.f32 %v481, %v491
    %v499 = vmul.f32 %v482, %v491
    %v500 = vmul.f32 %v483, %v491
    %v501 = vmul.f32 %v484, %v491
    %v502 = vmul.f32 %v485, %v491
    %v503 = vmul.f32 %v486, %v491
    %v504 = vmul.f32 %v487, %v491
    %v505 = vmul.f32 %v488, %v491
    %v506 = vmul.f32 %v489, %v491
    %v507 = vmul.f32 %v490, %v491
    %v508 = vadd.f32 %v457, %v492
    %v509 = vadd.f32 %v458, %v493
    %v510 = vadd.f32 %v459, %v494
    %v511 = vadd.f32 %v460, %v495
    %v512 = vadd.f32 %v461, %v496
    %v513 = vadd.f32 %v462, %v497
    %v514 = vadd.f32 %v463, %v498
    %v515 = vadd.f32 %v464, %v499
    %v516 = vadd.f32 %v465, %v500
    %v517 = vadd.f32 %v466, %v501
    %v518 = vadd.f32 %v467, %v502
    %v519 = vadd.f32 %v468, %v503
    %v520 = vadd.f32 %v469, %v504
    %v521 = vadd.f32 %v470, %v505
    %v522 = vadd.f32 %v471, %v506
    %v523 = vadd.f32 %v472, %v507
    %v524 = vld [vmem:[%s3 + $0x2] sm:$0x1]
    %s525 = scalar_lea.vmem [#allocation2], 16
    %v526 = vld [vmem:[%s525] sm:$0xff]
    %v527 = vld [vmem:[%s525 + $0x8] sm:$0xff]
    %v528 = vld [vmem:[%s525 + $0x10] sm:$0xff]
    %v529 = vld [vmem:[%s525 + $0x18] sm:$0xff]
    %v530 = vld [vmem:[%s525 + $0x30] sm:$0xff]
    %v531 = vld [vmem:[%s525 + $0x38] sm:$0xff]
    %v532 = vld [vmem:[%s525 + $0x40] sm:$0xff]
    %v533 = vld [vmem:[%s525 + $0x48] sm:$0xff]
    %v534 = vld [vmem:[%s525 + $0x60] sm:$0xff]
    %v535 = vld [vmem:[%s525 + $0x68] sm:$0xff]
    %v536 = vld [vmem:[%s525 + $0x70] sm:$0xff]
    %v537 = vld [vmem:[%s525 + $0x78] sm:$0xff]
    %v538 = vld [vmem:[%s525 + $0x90] sm:$0xff]
    %v539 = vld [vmem:[%s525 + $0x98] sm:$0xff]
    %v540 = vld [vmem:[%s525 + $0xa0] sm:$0xff]
    %v541 = vld [vmem:[%s525 + $0xa8] sm:$0xff]
    %v542 = vperm.slane %v524, 0
    %v543 = vmul.f32 %v526, %v542
    %v544 = vmul.f32 %v527, %v542
    %v545 = vmul.f32 %v528, %v542
    %v546 = vmul.f32 %v529, %v542
    %v547 = vmul.f32 %v530, %v542
    %v548 = vmul.f32 %v531, %v542
    %v549 = vmul.f32 %v532, %v542
    %v550 = vmul.f32 %v533, %v542
    %v551 = vmul.f32 %v534, %v542
    %v552 = vmul.f32 %v535, %v542
    %v553 = vmul.f32 %v536, %v542
    %v554 = vmul.f32 %v537, %v542
    %v555 = vmul.f32 %v538, %v542
    %v556 = vmul.f32 %v539, %v542
    %v557 = vmul.f32 %v540, %v542
    %v558 = vmul.f32 %v541, %v542
    %v559 = vadd.f32 %v508, %v543
    %v560 = vadd.f32 %v509, %v544
    %v561 = vadd.f32 %v510, %v545
    %v562 = vadd.f32 %v511, %v546
    %v563 = vadd.f32 %v512, %v547
    %v564 = vadd.f32 %v513, %v548
    %v565 = vadd.f32 %v514, %v549
    %v566 = vadd.f32 %v515, %v550
    %v567 = vadd.f32 %v516, %v551
    %v568 = vadd.f32 %v517, %v552
    %v569 = vadd.f32 %v518, %v553
    %v570 = vadd.f32 %v519, %v554
    %v571 = vadd.f32 %v520, %v555
    %v572 = vadd.f32 %v521, %v556
    %v573 = vadd.f32 %v522, %v557
    %v574 = vadd.f32 %v523, %v558
    %v575 = vld [vmem:[%s3 + $0x3] sm:$0x1]
    %s576 = scalar_lea.vmem [#allocation2], 48
    %v577 = vld [vmem:[%s576] sm:$0xff]
    %v578 = vld [vmem:[%s576 + $0x8] sm:$0xff]
    %v579 = vld [vmem:[%s576 + $0x10] sm:$0xff]
    %v580 = vld [vmem:[%s576 + $0x18] sm:$0xff]
    %v581 = vld [vmem:[%s576 + $0x30] sm:$0xff]
    %v582 = vld [vmem:[%s576 + $0x38] sm:$0xff]
    %v583 = vld [vmem:[%s576 + $0x40] sm:$0xff]
    %v584 = vld [vmem:[%s576 + $0x48] sm:$0xff]
    %v585 = vld [vmem:[%s576 + $0x60] sm:$0xff]
    %v586 = vld [vmem:[%s576 + $0x68] sm:$0xff]
    %v587 = vld [vmem:[%s576 + $0x70] sm:$0xff]
    %v588 = vld [vmem:[%s576 + $0x78] sm:$0xff]
    %v589 = vld [vmem:[%s576 + $0x90] sm:$0xff]
    %v590 = vld [vmem:[%s576 + $0x98] sm:$0xff]
    %v591 = vld [vmem:[%s576 + $0xa0] sm:$0xff]
    %v592 = vld [vmem:[%s576 + $0xa8] sm:$0xff]
    %v593 = vperm.slane %v575, 0
    %v594 = vmul.f32 %v577, %v593
    %v595 = vmul.f32 %v578, %v593
    %v596 = vmul.f32 %v579, %v593
    %v597 = vmul.f32 %v580, %v593
    %v598 = vmul.f32 %v581, %v593
    %v599 = vmul.f32 %v582, %v593
    %v600 = vmul.f32 %v583, %v593
    %v601 = vmul.f32 %v584, %v593
    %v602 = vmul.f32 %v585, %v593
    %v603 = vmul.f32 %v586, %v593
    %v604 = vmul.f32 %v587, %v593
    %v605 = vmul.f32 %v588, %v593
    %v606 = vmul.f32 %v589, %v593
    %v607 = vmul.f32 %v590, %v593
    %v608 = vmul.f32 %v591, %v593
    %v609 = vmul.f32 %v592, %v593
    %v610 = vadd.f32 %v559, %v594
    %v611 = vadd.f32 %v560, %v595
    %v612 = vadd.f32 %v561, %v596
    %v613 = vadd.f32 %v562, %v597
    %v614 = vadd.f32 %v563, %v598
    %v615 = vadd.f32 %v564, %v599
    %v616 = vadd.f32 %v565, %v600
    %v617 = vadd.f32 %v566, %v601
    %v618 = vadd.f32 %v567, %v602
    %v619 = vadd.f32 %v568, %v603
    %v620 = vadd.f32 %v569, %v604
    %v621 = vadd.f32 %v570, %v605
    %v622 = vadd.f32 %v571, %v606
    %v623 = vadd.f32 %v572, %v607
    %v624 = vadd.f32 %v573, %v608
    %v625 = vadd.f32 %v574, %v609
    %v626 = vld [vmem:[%s3 + $0x5] sm:$0x1]
    %s627 = scalar_lea.vmem [#allocation2], 64
    %v628 = vld [vmem:[%s627] sm:$0xff]
    %v629 = vld [vmem:[%s627 + $0x8] sm:$0xff]
    %v630 = vld [vmem:[%s627 + $0x10] sm:$0xff]
    %v631 = vld [vmem:[%s627 + $0x18] sm:$0xff]
    %v632 = vld [vmem:[%s627 + $0x30] sm:$0xff]
    %v633 = vld [vmem:[%s627 + $0x38] sm:$0xff]
    %v634 = vld [vmem:[%s627 + $0x40] sm:$0xff]
    %v635 = vld [vmem:[%s627 + $0x48] sm:$0xff]
    %v636 = vld [vmem:[%s627 + $0x60] sm:$0xff]
    %v637 = vld [vmem:[%s627 + $0x68] sm:$0xff]
    %v638 = vld [vmem:[%s627 + $0x70] sm:$0xff]
    %v639 = vld [vmem:[%s627 + $0x78] sm:$0xff]
    %v640 = vld [vmem:[%s627 + $0x90] sm:$0xff]
    %v641 = vld [vmem:[%s627 + $0x98] sm:$0xff]
    %v642 = vld [vmem:[%s627 + $0xa0] sm:$0xff]
    %v643 = vld [vmem:[%s627 + $0xa8] sm:$0xff]
    %v644 = vperm.slane %v626, 0
    %v645 = vmul.f32 %v628, %v644
    %v646 = vmul.f32 %v629, %v644
    %v647 = vmul.f32 %v630, %v644
    %v648 = vmul.f32 %v631, %v644
    %v649 = vmul.f32 %v632, %v644
    %v650 = vmul.f32 %v633, %v644
    %v651 = vmul.f32 %v634, %v644
    %v652 = vmul.f32 %v635, %v644
    %v653 = vmul.f32 %v636, %v644
    %v654 = vmul.f32 %v637, %v644
    %v655 = vmul.f32 %v638, %v644
    %v656 = vmul.f32 %v639, %v644
    %v657 = vmul.f32 %v640, %v644
    %v658 = vmul.f32 %v641, %v644
    %v659 = vmul.f32 %v642, %v644
    %v660 = vmul.f32 %v643, %v644
    %v661 = vadd.f32 %v610, %v645
    %v662 = vadd.f32 %v611, %v646
    %v663 = vadd.f32 %v612, %v647
    %v664 = vadd.f32 %v613, %v648
    %v665 = vadd.f32 %v614, %v649
    %v666 = vadd.f32 %v615, %v650
    %v667 = vadd.f32 %v616, %v651
    %v668 = vadd.f32 %v617, %v652
    %v669 = vadd.f32 %v618, %v653
    %v670 = vadd.f32 %v619, %v654
    %v671 = vadd.f32 %v620, %v655
    %v672 = vadd.f32 %v621, %v656
    %v673 = vadd.f32 %v622, %v657
    %v674 = vadd.f32 %v623, %v658
    %v675 = vadd.f32 %v624, %v659
    %v676 = vadd.f32 %v625, %v660
    %v677 = vld [vmem:[%s3 + $0x6] sm:$0x1]
    %s678 = scalar_lea.vmem [#allocation2], 96
    %v679 = vld [vmem:[%s678] sm:$0xff]
    %v680 = vld [vmem:[%s678 + $0x8] sm:$0xff]
    %v681 = vld [vmem:[%s678 + $0x10] sm:$0xff]
    %v682 = vld [vmem:[%s678 + $0x18] sm:$0xff]
    %v683 = vld [vmem:[%s678 + $0x30] sm:$0xff]
    %v684 = vld [vmem:[%s678 + $0x38] sm:$0xff]
    %v685 = vld [vmem:[%s678 + $0x40] sm:$0xff]
    %v686 = vld [vmem:[%s678 + $0x48] sm:$0xff]
    %v687 = vld [vmem:[%s678 + $0x60] sm:$0xff]
    %v688 = vld [vmem:[%s678 + $0x68] sm:$0xff]
    %v689 = vld [vmem:[%s678 + $0x70] sm:$0xff]
    %v690 = vld [vmem:[%s678 + $0x78] sm:$0xff]
    %v691 = vld [vmem:[%s678 + $0x90] sm:$0xff]
    %v692 = vld [vmem:[%s678 + $0x98] sm:$0xff]
    %v693 = vld [vmem:[%s678 + $0xa0] sm:$0xff]
    %v694 = vld [vmem:[%s678 + $0xa8] sm:$0xff]
    %v695 = vperm.slane %v677, 0
    %v696 = vmul.f32 %v679, %v695
    %v697 = vmul.f32 %v680, %v695
    %v698 = vmul.f32 %v681, %v695
    %v699 = vmul.f32 %v682, %v695
    %v700 = vmul.f32 %v683, %v695
    %v701 = vmul.f32 %v684, %v695
    %v702 = vmul.f32 %v685, %v695
    %v703 = vmul.f32 %v686, %v695
    %v704 = vmul.f32 %v687, %v695
    %v705 = vmul.f32 %v688, %v695
    %v706 = vmul.f32 %v689, %v695
    %v707 = vmul.f32 %v690, %v695
    %v708 = vmul.f32 %v691, %v695
    %v709 = vmul.f32 %v692, %v695
    %v710 = vmul.f32 %v693, %v695
    %v711 = vmul.f32 %v694, %v695
    %v712 = vadd.f32 %v661, %v696
    %v713 = vadd.f32 %v662, %v697
    %v714 = vadd.f32 %v663, %v698
    %v715 = vadd.f32 %v664, %v699
    %v716 = vadd.f32 %v665, %v700
    %v717 = vadd.f32 %v666, %v701
    %v718 = vadd.f32 %v667, %v702
    %v719 = vadd.f32 %v668, %v703
    %v720 = vadd.f32 %v669, %v704
    %v721 = vadd.f32 %v670, %v705
    %v722 = vadd.f32 %v671, %v706
    %v723 = vadd.f32 %v672, %v707
    %v724 = vadd.f32 %v673, %v708
    %v725 = vadd.f32 %v674, %v709
    %v726 = vadd.f32 %v675, %v710
    %v727 = vadd.f32 %v676, %v711
    %v728 = vld [vmem:[%s3 + $0x7] sm:$0x1]
    %s729 = scalar_lea.vmem [#allocation2], 104
    %v730 = vld [vmem:[%s729] sm:$0xff]
    %v731 = vld [vmem:[%s729 + $0x8] sm:$0xff]
    %v732 = vld [vmem:[%s729 + $0x10] sm:$0xff]
    %v733 = vld [vmem:[%s729 + $0x18] sm:$0xff]
    %v734 = vld [vmem:[%s729 + $0x30] sm:$0xff]
    %v735 = vld [vmem:[%s729 + $0x38] sm:$0xff]
    %v736 = vld [vmem:[%s729 + $0x40] sm:$0xff]
    %v737 = vld [vmem:[%s729 + $0x48] sm:$0xff]
    %v738 = vld [vmem:[%s729 + $0x60] sm:$0xff]
    %v739 = vld [vmem:[%s729 + $0x68] sm:$0xff]
    %v740 = vld [vmem:[%s729 + $0x70] sm:$0xff]
    %v741 = vld [vmem:[%s729 + $0x78] sm:$0xff]
    %v742 = vld [vmem:[%s729 + $0x90] sm:$0xff]
    %v743 = vld [vmem:[%s729 + $0x98] sm:$0xff]
    %v744 = vld [vmem:[%s729 + $0xa0] sm:$0xff]
    %v745 = vld [vmem:[%s729 + $0xa8] sm:$0xff]
    %v746 = vperm.slane %v728, 0
    %v747 = vmul.f32 %v730, %v746
    %v748 = vmul.f32 %v731, %v746
    %v749 = vmul.f32 %v732, %v746
    %v750 = vmul.f32 %v733, %v746
    %v751 = vmul.f32 %v734, %v746
    %v752 = vmul.f32 %v735, %v746
    %v753 = vmul.f32 %v736, %v746
    %v754 = vmul.f32 %v737, %v746
    %v755 = vmul.f32 %v738, %v746
    %v756 = vmul.f32 %v739, %v746
    %v757 = vmul.f32 %v740, %v746
    %v758 = vmul.f32 %v741, %v746
    %v759 = vmul.f32 %v742, %v746
    %v760 = vmul.f32 %v743, %v746
    %v761 = vmul.f32 %v744, %v746
    %v762 = vmul.f32 %v745, %v746
    %v763 = vadd.f32 %v712, %v747
    %v764 = vadd.f32 %v713, %v748
    %v765 = vadd.f32 %v714, %v749
    %v766 = vadd.f32 %v715, %v750
    %v767 = vadd.f32 %v716, %v751
    %v768 = vadd.f32 %v717, %v752
    %v769 = vadd.f32 %v718, %v753
    %v770 = vadd.f32 %v719, %v754
    %v771 = vadd.f32 %v720, %v755
    %v772 = vadd.f32 %v721, %v756
    %v773 = vadd.f32 %v722, %v757
    %v774 = vadd.f32 %v723, %v758
    %v775 = vadd.f32 %v724, %v759
    %v776 = vadd.f32 %v725, %v760
    %v777 = vadd.f32 %v726, %v761
    %v778 = vadd.f32 %v727, %v762
    %v779 = vld [vmem:[%s3 + $0x8] sm:$0x1]
    %s780 = scalar_lea.vmem [#allocation2], 112
    %v781 = vld [vmem:[%s780] sm:$0xff]
    %v782 = vld [vmem:[%s780 + $0x8] sm:$0xff]
    %v783 = vld [vmem:[%s780 + $0x10] sm:$0xff]
    %v784 = vld [vmem:[%s780 + $0x18] sm:$0xff]
    %v785 = vld [vmem:[%s780 + $0x30] sm:$0xff]
    %v786 = vld [vmem:[%s780 + $0x38] sm:$0xff]
    %v787 = vld [vmem:[%s780 + $0x40] sm:$0xff]
    %v788 = vld [vmem:[%s780 + $0x48] sm:$0xff]
    %v789 = vld [vmem:[%s780 + $0x60] sm:$0xff]
    %v790 = vld [vmem:[%s780 + $0x68] sm:$0xff]
    %v791 = vld [vmem:[%s780 + $0x70] sm:$0xff]
    %v792 = vld [vmem:[%s780 + $0x78] sm:$0xff]
    %v793 = vld [vmem:[%s780 + $0x90] sm:$0xff]
    %v794 = vld [vmem:[%s780 + $0x98] sm:$0xff]
    %v795 = vld [vmem:[%s780 + $0xa0] sm:$0xff]
    %v796 = vld [vmem:[%s780 + $0xa8] sm:$0xff]
    %v797 = vperm.slane %v779, 0
    %v798 = vmul.f32 %v781, %v797
    %v799 = vmul.f32 %v782, %v797
    %v800 = vmul.f32 %v783, %v797
    %v801 = vmul.f32 %v784, %v797
    %v802 = vmul.f32 %v785, %v797
    %v803 = vmul.f32 %v786, %v797
    %v804 = vmul.f32 %v787, %v797
    %v805 = vmul.f32 %v788, %v797
    %v806 = vmul.f32 %v789, %v797
    %v807 = vmul.f32 %v790, %v797
    %v808 = vmul.f32 %v791, %v797
    %v809 = vmul.f32 %v792, %v797
    %v810 = vmul.f32 %v793, %v797
    %v811 = vmul.f32 %v794, %v797
    %v812 = vmul.f32 %v795, %v797
    %v813 = vmul.f32 %v796, %v797
    %v814 = vadd.f32 %v763, %v798
    %v815 = vadd.f32 %v764, %v799
    %v816 = vadd.f32 %v765, %v800
    %v817 = vadd.f32 %v766, %v801
    %v818 = vadd.f32 %v767, %v802
    %v819 = vadd.f32 %v768, %v803
    %v820 = vadd.f32 %v769, %v804
    %v821 = vadd.f32 %v770, %v805
    %v822 = vadd.f32 %v771, %v806
    %v823 = vadd.f32 %v772, %v807
    %v824 = vadd.f32 %v773, %v808
    %v825 = vadd.f32 %v774, %v809
    %v826 = vadd.f32 %v775, %v810
    %v827 = vadd.f32 %v776, %v811
    %v828 = vadd.f32 %v777, %v812
    %v829 = vadd.f32 %v778, %v813
    %v830 = vmul.f32 %v814, 0.5
    %v831 = vmul.f32 %v815, 0.5
    %v832 = vmul.f32 %v816, 0.5
    %v833 = vmul.f32 %v817, 0.5
    %v834 = vmul.f32 %v818, 0.5
    %v835 = vmul.f32 %v819, 0.5
    %v836 = vmul.f32 %v820, 0.5
    %v837 = vmul.f32 %v821, 0.5
    %v838 = vmul.f32 %v822, 0.5
    %v839 = vmul.f32 %v823, 0.5
    %v840 = vmul.f32 %v824, 0.5
    %v841 = vmul.f32 %v825, 0.5
    %v842 = vmul.f32 %v826, 0.5
    %v843 = vmul.f32 %v827, 0.5
    %v844 = vmul.f32 %v828, 0.5
    %v845 = vmul.f32 %v829, 0.5
    %v846 = vmul.f32 %v814, 0.044715
    %v847 = vmul.f32 %v815, 0.044715
    %v848 = vmul.f32 %v816, 0.044715
    %v849 = vmul.f32 %v817, 0.044715
    %v850 = vmul.f32 %v818, 0.044715
    %v851 = vmul.f32 %v819, 0.044715
    %v852 = vmul.f32 %v820, 0.044715
    %v853 = vmul.f32 %v821, 0.044715
    %v854 = vmul.f32 %v822, 0.044715
    %v855 = vmul.f32 %v823, 0.044715
    %v856 = vmul.f32 %v824, 0.044715
    %v857 = vmul.f32 %v825, 0.044715
    %v858 = vmul.f32 %v826, 0.044715
    %v859 = vmul.f32 %v827, 0.044715
    %v860 = vmul.f32 %v828, 0.044715
    %v861 = vmul.f32 %v829, 0.044715
    %v862 = vmul.f32 %v846, %v814
    %v863 = vmul.f32 %v847, %v815
    %v864 = vmul.f32 %v848, %v816
    %v865 = vmul.f32 %v849, %v817
    %v866 = vmul.f32 %v850, %v818
    %v867 = vmul.f32 %v851, %v819
    %v868 = vmul.f32 %v852, %v820
    %v869 = vmul.f32 %v853, %v821
    %v870 = vmul.f32 %v854, %v822
    %v871 = vmul.f32 %v855, %v823
    %v872 = vmul.f32 %v856, %v824
    %v873 = vmul.f32 %v857, %v825
    %v874 = vmul.f32 %v858, %v826
    %v875 = vmul.f32 %v859, %v827
    %v876 = vmul.f32 %v860, %v828
    %v877 = vmul.f32 %v861, %v829
    %v878 = vmul.f32 %v862, %v814
    %v879 = vmul.f32 %v863, %v815
    %v880 = vmul.f32 %v864, %v816
    %v881 = vmul.f32 %v865, %v817
    %v882 = vmul.f32 %v866, %v818
    %v883 = vmul.f32 %v867, %v819
    %v884 = vmul.f32 %v868, %v820
    %v885 = vmul.f32 %v869, %v821
    %v886 = vmul.f32 %v870, %v822
    %v887 = vmul.f32 %v871, %v823
    %v888 = vmul.f32 %v872, %v824
    %v889 = vmul.f32 %v873, %v825
    %v890 = vmul.f32 %v874, %v826
    %v891 = vmul.f32 %v875, %v827
    %v892 = vmul.f32 %v876, %v828
    %v893 = vmul.f32 %v877, %v829
    %v894 = vadd.f32 %v814, %v878
    %v895 = vadd.f32 %v815, %v879
    %v896 = vadd.f32 %v816, %v880
    %v897 = vadd.f32 %v817, %v881
    %v898 = vadd.f32 %v818, %v882
    %v899 = vadd.f32 %v819, %v883
    %v900 = vadd.f32 %v820, %v884
    %v901 = vadd.f32 %v821, %v885
    %v902 = vadd.f32 %v822, %v886
    %v903 = vadd.f32 %v823, %v887
    %v904 = vadd.f32 %v824, %v888
    %v905 = vadd.f32 %v825, %v889
    %v906 = vadd.f32 %v826, %v890
    %v907 = vadd.f32 %v827, %v891
    %v908 = vadd.f32 %v828, %v892
    %v909 = vadd.f32 %v829, %v893
    %v910 = vmul.f32 %v894, 0.7978846
    %v911 = vmul.f32 %v895, 0.7978846
    %v912 = vmul.f32 %v896, 0.7978846
    %v913 = vmul.f32 %v897, 0.7978846
    %v914 = vmul.f32 %v898, 0.7978846
    %v915 = vmul.f32 %v899, 0.7978846
    %v916 = vmul.f32 %v900, 0.7978846
    %v917 = vmul.f32 %v901, 0.7978846
    %v918 = vmul.f32 %v902, 0.7978846
    %v919 = vmul.f32 %v903, 0.7978846
    %v920 = vmul.f32 %v904, 0.7978846
    %v921 = vmul.f32 %v905, 0.7978846
    %v922 = vmul.f32 %v906, 0.7978846
    %v923 = vmul.f32 %v907, 0.7978846
    %v924 = vmul.f32 %v908, 0.7978846
    %v925 = vmul.f32 %v909, 0.7978846
    %v926 = vtanh.pop %v910
    %v927 = vtanh.pop %v911
    %v928 = vtanh.pop %v912
    %v929 = vtanh.pop %v913
    %v930 = vtanh.pop %v914
    %v931 = vtanh.pop %v915
    %v932 = vtanh.pop %v916
    %v933 = vtanh.pop %v917
    %v934 = vtanh.pop %v918
    %v935 = vtanh.pop %v919
    %v936 = vtanh.pop %v920
    %v937 = vtanh.pop %v921
    %v938 = vtanh.pop %v922
    %v939 = vtanh.pop %v923
    %v940 = vtanh.pop %v924
    %v941 = vtanh.pop %v925
    %v942 = vadd.f32 %v926, 1.0
    %v943 = vadd.f32 %v927, 1.0
    %v944 = vadd.f32 %v928, 1.0
    %v945 = vadd.f32 %v929, 1.0
    %v946 = vadd.f32 %v930, 1.0
    %v947 = vadd.f32 %v931, 1.0
    %v948 = vadd.f32 %v932, 1.0
    %v949 = vadd.f32 %v933, 1.0
    %v950 = vadd.f32 %v934, 1.0
    %v951 = vadd.f32 %v935, 1.0
    %v952 = vadd.f32 %v936, 1.0
    %v953 = vadd.f32 %v937, 1.0
    %v954 = vadd.f32 %v938, 1.0
    %v955 = vadd.f32 %v939, 1.0
    %v956 = vadd.f32 %v940, 1.0
    %v957 = vadd.f32 %v941, 1.0
    %v958 = vmul.f32 %v830, %v942
    %v959 = vmul.f32 %v831, %v943
    %v960 = vmul.f32 %v832, %v944
    %v961 = vmul.f32 %v833, %v945
    %v962 = vmul.f32 %v834, %v946
    %v963 = vmul.f32 %v835, %v947
    %v964 = vmul.f32 %v836, %v948
    %v965 = vmul.f32 %v837, %v949
    %v966 = vmul.f32 %v838, %v950
    %v967 = vmul.f32 %v839, %v951
    %v968 = vmul.f32 %v840, %v952
    %v969 = vmul.f32 %v841, %v953
    %v970 = vmul.f32 %v842, %v954
    %v971 = vmul.f32 %v843, %v955
    %v972 = vmul.f32 %v844, %v956
    %v973 = vmul.f32 %v845, %v957
    %v974 = vld [vmem:[%s5] sm:$0xff]
    %v975 = vld [vmem:[%s5 + $0x8] sm:$0xff]
    %v976 = vld [vmem:[%s5 + $0x10] sm:$0xff]
    %v977 = vld [vmem:[%s5 + $0x18] sm:$0xff]
    %v978 = vld [vmem:[%s5 + $0x20] sm:$0xff]
    %v979 = vld [vmem:[%s5 + $0x28] sm:$0xff]
    %v980 = vld [vmem:[%s5 + $0x30] sm:$0xff]
    %v981 = vld [vmem:[%s5 + $0x38] sm:$0xff]
    %v982 = vld [vmem:[%s6] sm:$0x1]
    %v984 = vperm.slane %v982, 0
    %v987 = vsel %vm325, %v958, 0
    %v990 = vsel %vm325, %v959, 0
    %v993 = vsel %vm325, %v960, 0
    %v996 = vsel %vm325, %v961, 0
    %v999 = vsel %vm325, %v962, 0
    %v1002 = vsel %vm325, %v963, 0
    %v1005 = vsel %vm325, %v964, 0
    %v1008 = vsel %vm325, %v965, 0
    %v1011 = vsel %vm325, %v966, 0
    %v1014 = vsel %vm325, %v967, 0
    %v1017 = vsel %vm325, %v968, 0
    %v1020 = vsel %vm325, %v969, 0
    %v1023 = vsel %vm325, %v970, 0
    %v1026 = vsel %vm325, %v971, 0
    %v1029 = vsel %vm325, %v972, 0
    %v1032 = vsel %vm325, %v973, 0
    %1034 = vmatpush.msra.mxu0 0.0
    %1035 = vmatpush.msra.mxu0 0.0
    %1036 = vmatpush.msra.mxu0 0.0
    %1037 = vmatpush.msra.mxu0 0.0
    %1038 = vmatpush.msra.mxu0 0.0
    %1039 = vmatpush.msra.mxu0 0.0
    %1040 = vmatpush.msra.mxu0 0.0
    %1041 = vmatpush.msra.mxu0 0.0
    %1042 = vmatpush.msra.mxu0 %v981
    %1043 = vmatpush.msra.mxu0 %v980
    %1044 = vmatpush.msra.mxu0 %v979
    %1045 = vmatpush.msra.mxu0 %v978
    %1046 = vmatpush.msra.mxu0 %v977
    %1047 = vmatpush.msra.mxu0 %v976
    %1048 = vmatpush.msra.mxu0 %v975
    %1049 = vmatpush.msra.mxu0 %v974
    %1050 = vmatmul.f32.gmra.mxu0 %v987
    %v1051 = vpop.f32.mrf.mxu0
    %v1052 = vadd.f32 %v984, %v1051
    %1053 = vmatmul.f32.gmra.mxu0 %v990
    %v1054 = vpop.f32.mrf.mxu0
    %v1055 = vadd.f32 %v984, %v1054
    %1056 = vmatmul.f32.gmra.mxu0 %v993
    %v1057 = vpop.f32.mrf.mxu0
    %v1058 = vadd.f32 %v984, %v1057
    %1059 = vmatmul.f32.gmra.mxu0 %v996
    %v1060 = vpop.f32.mrf.mxu0
    %v1061 = vadd.f32 %v984, %v1060
    %1062 = vmatmul.f32.gmra.mxu0 %v999
    %v1063 = vpop.f32.mrf.mxu0
    %v1064 = vadd.f32 %v984, %v1063
    %1065 = vmatmul.f32.gmra.mxu0 %v1002
    %v1066 = vpop.f32.mrf.mxu0
    %v1067 = vadd.f32 %v984, %v1066
    %1068 = vmatmul.f32.gmra.mxu0 %v1005
    %v1069 = vpop.f32.mrf.mxu0
    %v1070 = vadd.f32 %v984, %v1069
    %1071 = vmatmul.f32.gmra.mxu0 %v1008
    %v1072 = vpop.f32.mrf.mxu0
    %v1073 = vadd.f32 %v984, %v1072
    %1074 = vmatmul.f32.gmra.mxu0 %v1011
    %v1075 = vpop.f32.mrf.mxu0
    %v1076 = vadd.f32 %v984, %v1075
    %1077 = vmatmul.f32.gmra.mxu0 %v1014
    %v1078 = vpop.f32.mrf.mxu0
    %v1079 = vadd.f32 %v984, %v1078
    %1080 = vmatmul.f32.gmra.mxu0 %v1017
    %v1081 = vpop.f32.mrf.mxu0
    %v1082 = vadd.f32 %v984, %v1081
    %1083 = vmatmul.f32.gmra.mxu0 %v1020
    %v1084 = vpop.f32.mrf.mxu0
    %v1085 = vadd.f32 %v984, %v1084
    %1086 = vmatmul.f32.gmra.mxu0 %v1023
    %v1087 = vpop.f32.mrf.mxu0
    %v1088 = vadd.f32 %v984, %v1087
    %1089 = vmatmul.f32.gmra.mxu0 %v1026
    %v1090 = vpop.f32.mrf.mxu0
    %v1091 = vadd.f32 %v984, %v1090
    %1092 = vmatmul.f32.gmra.mxu0 %v1029
    %v1093 = vpop.f32.mrf.mxu0
    %v1094 = vadd.f32 %v984, %v1093
    %1095 = vmatmul.f32.gmra.mxu0 %v1032
    %v1096 = vpop.f32.mrf.mxu0
    %v1097 = vadd.f32 %v984, %v1096
    %1098 = vdwg.mxu0
    %1099 = vst.msk [vmem:[#allocation6] sm:$0xff] %vm67, %v1052
    %1100 = vst.msk [vmem:[#allocation6 + $0x8] sm:$0xff] %vm67, %v1055
    %1101 = vst.msk [vmem:[#allocation6 + $0x10] sm:$0xff] %vm67, %v1058
    %1102 = vst.msk [vmem:[#allocation6 + $0x18] sm:$0xff] %vm67, %v1061
    %1103 = vst.msk [vmem:[#allocation6 + $0x20] sm:$0xff] %vm67, %v1064
    %1104 = vst.msk [vmem:[#allocation6 + $0x28] sm:$0xff] %vm67, %v1067
    %1105 = vst.msk [vmem:[#allocation6 + $0x30] sm:$0xff] %vm67, %v1070
    %1106 = vst.msk [vmem:[#allocation6 + $0x38] sm:$0xff] %vm67, %v1073
    %1107 = vst.msk [vmem:[#allocation6 + $0x40] sm:$0xff] %vm67, %v1076
    %1108 = vst.msk [vmem:[#allocation6 + $0x48] sm:$0xff] %vm67, %v1079
    %1109 = vst.msk [vmem:[#allocation6 + $0x50] sm:$0xff] %vm67, %v1082
    %1110 = vst.msk [vmem:[#allocation6 + $0x58] sm:$0xff] %vm67, %v1085
    %1111 = vst.msk [vmem:[#allocation6 + $0x60] sm:$0xff] %vm67, %v1088
    %1112 = vst.msk [vmem:[#allocation6 + $0x68] sm:$0xff] %vm67, %v1091
    %1113 = vst.msk [vmem:[#allocation6 + $0x70] sm:$0xff] %vm67, %v1094
    %1114 = vst.msk [vmem:[#allocation6 + $0x78] sm:$0xff] %vm67, %v1097
    // Predicated region
    $region34: #{tpu_custom_call.1} parent=1 // pred_check
      _
    $region35: #{tpu_custom_call.1} parent=1 // pred_check_branch
      %1116 = sbr.rel (0) target = $region37
    $region36: #{tpu_custom_call.1} parent=1 // pred_region
      %1118 = vsyncadd [#allocation5], 0
      %s1119 = sshll.u32 [#allocation6], 4
      %s1120 = int_to_ptr.vmem [resolvable:$true] %s1119
      %s1121 = sshll.u32 %s7, 4
      %s1122 = int_to_ptr.hbm [resolvable:$true] %s1121
      %1127 = dma.vmem_to_hbm [thread:$0]  %s1120, 2048, %s1122, [#allocation5], 128, 128, 8
    $region37: #{tpu_custom_call.1} parent=1 // pred_fallthru
      _
    // Predicated region
    $region38: #{tpu_custom_call.1} parent=1 // pred_check
      _
    $region39: #{tpu_custom_call.1} parent=1 // pred_check_branch
      %1129 = sbr.rel (0) target = $region41
    $region40: #{tpu_custom_call.1} parent=1 // pred_region
      %1131 = dma.done [#allocation5], 2048
    $region41: #{tpu_custom_call.1} parent=1 // pred_fallthru
      _
    %1132 = vsyncpa [#allocation4], 1
    %1133 = vsyncpa [#allocation5], 1

</llo_original>
